<compile_context>
chip_gen: v7x
topology: tpu7x:2x2x1
jax: 0.10.0
libtpu: 0.0.40
codegen_flags: <defaults>
</compile_context>

<pallas_src>
import functools
import math

import jax
import jax.numpy as jnp
from jax import lax
from jax.experimental import pallas as pl
from jax.experimental.pallas import tpu as pltpu


def _aspp_kernel(x_ref, w_ref, b_ref, o_ref, y_ref, *, offsets, L, K):
    # x_ref: (1, C, R)   bf16  channel-major, max-dilation padded, flattened input
    # w_ref: (T*K, C)    bf16  all taps' weights; rows [idx*K, idx*K+K) belong to tap idx
    # b_ref: (K, 1)      f32   summed bias (biases of all branches simply add)
    # o_ref: (1, K, L)   f32   lane-dense "stretched" NCHW output
    # y_ref: (T*K, R)    f32   VMEM scratch: result of the single wide matmul
    y_ref[...] = jnp.dot(w_ref[...], x_ref[0],
                         preferred_element_type=jnp.float32)   # (T*K, R)

    # 27 statically-unrolled shifted slice-adds; (K, L) pieces are lane-dense
    # (3 f32 vregs each) and the running sum lives in registers.
    acc = None
    for idx, delta in enumerate(offsets):
        part = y_ref[pl.ds(idx * K, K), pl.ds(delta, L)]        # (K, L)
        acc = part if acc is None else acc + part

    o_ref[0] = acc + b_ref[...]                                 # broadcast bias over lanes


def classifier_module_forward(x_nchw, weights, biases, dilations):
    """x_nchw: (N, 256, H, W). weights: (n_conv, K, 256, 3, 3) (PyTorch OIHW).
    biases: (n_conv, K). Returns (N, K, H, W). Assumes padding_series == dilation_series
    (every branch keeps the input spatial size, as in the intended module use)."""
    N, C, H, W = x_nchw.shape
    n_conv, K = biases.shape
    pad = max(dilations)
    Hp, Wp = H + 2 * pad, W + 2 * pad

    # Glue: keep channel-major (no transpose); bf16; zero-pad spatially by max dilation;
    # flatten spatial; append (Wp - W) == 2*pad extra zero columns so every tap's
    # stretched slab of length L = H*Wp stays in-bounds.
    x_pad = jnp.pad(x_nchw.astype(jnp.bfloat16),
                    ((0, 0), (0, 0), (pad, pad), (pad, pad)))
    x_flat = x_pad.reshape(N, C, Hp * Wp)
    x_flat = jnp.pad(x_flat, ((0, 0), (0, 0), (0, Wp - W)))
    R = Hp * Wp + (Wp - W)

    # Glue: OIHW -> (conv, ky, kx, k) row order, lane-dense over C, bf16.
    w_flat = jnp.transpose(weights, (0, 3, 4, 1, 2)).astype(jnp.bfloat16)  # (n_conv,3,3,K,C)
    w_flat = w_flat.reshape(n_conv * 9 * K, C)

    # Biases of all branches simply add; (K, 1) broadcasts over lanes in-kernel.
    b_sum = jnp.sum(biases.astype(jnp.float32), axis=0).reshape(K, 1)

    # Static flat offsets for every (conv, ky, kx) tap: h0*Wp + w0.
    offsets = tuple(
        (pad - d + ky * d) * Wp + (pad - d + kx * d)
        for d in dilations for ky in range(3) for kx in range(3)
    )

    L = H * Wp          # stretched output length; Wp-W junk columns sliced off below
    T = n_conv * 9      # total taps

    kernel = functools.partial(_aspp_kernel, offsets=offsets, L=L, K=K)

    out_kl = pl.pallas_call(
        kernel,
        out_shape=jax.ShapeDtypeStruct((N, K, L), jnp.float32),
        grid_spec=pltpu.PrefetchScalarGridSpec(
            num_scalar_prefetch=0,
            grid=(N,),
            in_specs=[
                pl.BlockSpec((1, C, R), lambda n: (n, 0, 0)),
                pl.BlockSpec((T * K, C), lambda n: (0, 0)),
                pl.BlockSpec((K, 1), lambda n: (0, 0)),
            ],
            out_specs=pl.BlockSpec((1, K, L), lambda n: (n, 0, 0)),
            scratch_shapes=[pltpu.VMEM((T * K, R), jnp.float32)],
        ),
        compiler_params=pltpu.CompilerParams(
            dimension_semantics=("parallel",),
            vmem_limit_bytes=32 * 1024 * 1024,
        ),
    )(x_flat, w_flat, b_sum)

    # (N, K, H*Wp) is already NCHW-flattened (stretched): reshape + drop padded columns.
    return out_kl.reshape(N, K, H, Wp)[:, :, :, :W]


def reference_forward(x_nchw, weights, biases, dilations):
    """Pure-JAX (f32) reference mirroring the PyTorch forward (sum of dilated convs)."""
    out = None
    for c, d in enumerate(dilations):
        y = lax.conv_general_dilated(
            x_nchw.astype(jnp.float32),
            weights[c].astype(jnp.float32),
            window_strides=(1, 1),
            padding=[(d, d), (d, d)],
            rhs_dilation=(d, d),
            dimension_numbers=("NCHW", "OIHW", "NCHW"),
        ) + biases[c].astype(jnp.float32)[None, :, None, None]
        out = y if out is None else out + y
    return out


if __name__ == "__main__":
    # Module config (padding_series == dilation_series, as in standard ASPP use).
    dilation_series = [1, 2, 4]
    padding_series = [1, 2, 4]
    num_classes = 8
    assert list(dilation_series) == list(padding_series)

    # in_channels is fixed at 256 by the module definition.
    N, C, H, W = 2, 256, 16, 16

    key = jax.random.PRNGKey(0)
    kx, kw, kb = jax.random.split(key, 3)

    x = jax.random.normal(kx, (N, C, H, W), dtype=jnp.float32)

    n_conv = len(dilation_series)
    # weight.data.normal_(0, 0.01), PyTorch OIHW layout.
    weights = 0.01 * jax.random.normal(kw, (n_conv, num_classes, C, 3, 3), dtype=jnp.float32)
    # PyTorch Conv2d default bias init: U(-1/sqrt(fan_in), 1/sqrt(fan_in)), fan_in = C*3*3.
    bound = 1.0 / math.sqrt(C * 3 * 3)
    biases = jax.random.uniform(
        kb, (n_conv, num_classes), minval=-bound, maxval=bound, dtype=jnp.float32
    )

    out = classifier_module_forward(x, weights, biases, dilation_series)
    out = jax.block_until_ready(out)

    ref = jax.block_until_ready(reference_forward(x, weights, biases, dilation_series))

    assert out.shape == (N, num_classes, H, W)
    # bf16 inputs with f32 accumulation: loosen tolerance accordingly.
    assert jnp.allclose(out, ref, rtol=3e-2, atol=3e-2), "Pallas output mismatch vs reference"

    print("KERNEL_OK")
</pallas_src>

<mosaic_0001>
module attributes {stable_mosaic.version = 11 : i64} {
  func.func @_aspp_kernel(%arg0: i32, %arg1: memref<1x256x584xbf16, #tpu.memory_space<vmem>>, %arg2: memref<216x256xbf16, #tpu.memory_space<vmem>>, %arg3: memref<8x1xf32, #tpu.memory_space<vmem>>, %arg4: memref<1x8x384xf32, #tpu.memory_space<vmem>>, %arg5: memref<216x584xf32, #tpu.memory_space<vmem>>) attributes {dimension_semantics = [#tpu.dimension_semantics<parallel>], iteration_bounds = array<i64: 2>, scalar_prefetch = 0 : i64, scratch_operands = 1 : i64, tpu.core_type = #tpu.core_type<tc>, window_params = [{transform_indices = @transform_0, window_bounds = array<i64: 1, 256, 584>}, {pipeline_mode = #tpu.pipeline_mode<synchronous>, transform_indices = @transform_1, window_bounds = array<i64: 216, 256>}, {pipeline_mode = #tpu.pipeline_mode<synchronous>, transform_indices = @transform_2, window_bounds = array<i64: 8, 1>}, {transform_indices = @transform_3, window_bounds = array<i64: 1, 8, 384>}]} {
    %c0 = arith.constant 0 : index
    %c0_0 = arith.constant 0 : index
    %0 = vector.load %arg2[%c0, %c0_0] : memref<216x256xbf16, #tpu.memory_space<vmem>>, vector<216x256xbf16>
    %c0_1 = arith.constant 0 : index
    %c0_2 = arith.constant 0 : index
    %c0_3 = arith.constant 0 : index
    %1 = vector.load %arg1[%c0_1, %c0_2, %c0_3] : memref<1x256x584xbf16, #tpu.memory_space<vmem>>, vector<1x256x584xbf16>
    %2 = vector.shape_cast %1 : vector<1x256x584xbf16> to vector<256x584xbf16>
    %cst = arith.constant dense<0.000000e+00> : vector<216x584xf32>
    %3 = tpu.matmul %0, %2, %cst {dimension_numbers = #tpu.dot_dimension_numbers<[1], [0], [0], [1], [0, 0, 1, 1], [], []>} : vector<216x256xbf16>, vector<256x584xbf16>, vector<216x584xf32> -> vector<216x584xf32>
    %c0_4 = arith.constant 0 : index
    %c0_5 = arith.constant 0 : index
    %4 = vector.load %arg5[%c0_4, %c0_5] : memref<216x584xf32, #tpu.memory_space<vmem>>, vector<216x584xf32>
    tpu.vector_store %arg5[%c0_4, %c0_5], %3 {strides = array<i32>} : memref<216x584xf32, #tpu.memory_space<vmem>>, vector<216x584xf32>,
    %c0_6 = arith.constant 0 : index
    %c75 = arith.constant 75 : index
    %5 = vector.load %arg5[%c0_6, %c75] : memref<216x584xf32, #tpu.memory_space<vmem>>, vector<8x384xf32>
    %c8 = arith.constant 8 : index
    %c76 = arith.constant 76 : index
    %6 = vector.load %arg5[%c8, %c76] : memref<216x584xf32, #tpu.memory_space<vmem>>, vector<8x384xf32>
    %7 = arith.addf %5, %6 : vector<8x384xf32>
    %c16 = arith.constant 16 : index
    %c77 = arith.constant 77 : index
    %8 = vector.load %arg5[%c16, %c77] : memref<216x584xf32, #tpu.memory_space<vmem>>, vector<8x384xf32>
    %9 = arith.addf %7, %8 : vector<8x384xf32>
    %c24 = arith.constant 24 : index
    %c99 = arith.constant 99 : index
    %10 = vector.load %arg5[%c24, %c99] : memref<216x584xf32, #tpu.memory_space<vmem>>, vector<8x384xf32>
    %11 = arith.addf %9, %10 : vector<8x384xf32>
    %c32 = arith.constant 32 : index
    %c100 = arith.constant 100 : index
    %12 = vector.load %arg5[%c32, %c100] : memref<216x584xf32, #tpu.memory_space<vmem>>, vector<8x384xf32>
    %13 = arith.addf %11, %12 : vector<8x384xf32>
    %c40 = arith.constant 40 : index
    %c101 = arith.constant 101 : index
    %14 = vector.load %arg5[%c40, %c101] : memref<216x584xf32, #tpu.memory_space<vmem>>, vector<8x384xf32>
    %15 = arith.addf %13, %14 : vector<8x384xf32>
    %c48 = arith.constant 48 : index
    %c123 = arith.constant 123 : index
    %16 = vector.load %arg5[%c48, %c123] : memref<216x584xf32, #tpu.memory_space<vmem>>, vector<8x384xf32>
    %17 = arith.addf %15, %16 : vector<8x384xf32>
    %c56 = arith.constant 56 : index
    %c124 = arith.constant 124 : index
    %18 = vector.load %arg5[%c56, %c124] : memref<216x584xf32, #tpu.memory_space<vmem>>, vector<8x384xf32>
    %19 = arith.addf %17, %18 : vector<8x384xf32>
    %c64 = arith.constant 64 : index
    %c125 = arith.constant 125 : index
    %20 = vector.load %arg5[%c64, %c125] : memref<216x584xf32, #tpu.memory_space<vmem>>, vector<8x384xf32>
    %21 = arith.addf %19, %20 : vector<8x384xf32>
    %c72 = arith.constant 72 : index
    %c50 = arith.constant 50 : index
    %22 = vector.load %arg5[%c72, %c50] : memref<216x584xf32, #tpu.memory_space<vmem>>, vector<8x384xf32>
    %23 = arith.addf %21, %22 : vector<8x384xf32>
    %c80 = arith.constant 80 : index
    %c52 = arith.constant 52 : index
    %24 = vector.load %arg5[%c80, %c52] : memref<216x584xf32, #tpu.memory_space<vmem>>, vector<8x384xf32>
    %25 = arith.addf %23, %24 : vector<8x384xf32>
    %c88 = arith.constant 88 : index
    %c54 = arith.constant 54 : index
    %26 = vector.load %arg5[%c88, %c54] : memref<216x584xf32, #tpu.memory_space<vmem>>, vector<8x384xf32>
    %27 = arith.addf %25, %26 : vector<8x384xf32>
    %c96 = arith.constant 96 : index
    %c98 = arith.constant 98 : index
    %28 = vector.load %arg5[%c96, %c98] : memref<216x584xf32, #tpu.memory_space<vmem>>, vector<8x384xf32>
    %29 = arith.addf %27, %28 : vector<8x384xf32>
    %c104 = arith.constant 104 : index
    %c100_7 = arith.constant 100 : index
    %30 = vector.load %arg5[%c104, %c100_7] : memref<216x584xf32, #tpu.memory_space<vmem>>, vector<8x384xf32>
    %31 = arith.addf %29, %30 : vector<8x384xf32>
    %c112 = arith.constant 112 : index
    %c102 = arith.constant 102 : index
    %32 = vector.load %arg5[%c112, %c102] : memref<216x584xf32, #tpu.memory_space<vmem>>, vector<8x384xf32>
    %33 = arith.addf %31, %32 : vector<8x384xf32>
    %c120 = arith.constant 120 : index
    %c146 = arith.constant 146 : index
    %34 = vector.load %arg5[%c120, %c146] : memref<216x584xf32, #tpu.memory_space<vmem>>, vector<8x384xf32>
    %35 = arith.addf %33, %34 : vector<8x384xf32>
    %c128 = arith.constant 128 : index
    %c148 = arith.constant 148 : index
    %36 = vector.load %arg5[%c128, %c148] : memref<216x584xf32, #tpu.memory_space<vmem>>, vector<8x384xf32>
    %37 = arith.addf %35, %36 : vector<8x384xf32>
    %c136 = arith.constant 136 : index
    %c150 = arith.constant 150 : index
    %38 = vector.load %arg5[%c136, %c150] : memref<216x584xf32, #tpu.memory_space<vmem>>, vector<8x384xf32>
    %39 = arith.addf %37, %38 : vector<8x384xf32>
    %c144 = arith.constant 144 : index
    %c0_8 = arith.constant 0 : index
    %40 = vector.load %arg5[%c144, %c0_8] : memref<216x584xf32, #tpu.memory_space<vmem>>, vector<8x384xf32>
    %41 = arith.addf %39, %40 : vector<8x384xf32>
    %c152 = arith.constant 152 : index
    %c4 = arith.constant 4 : index
    %42 = vector.load %arg5[%c152, %c4] : memref<216x584xf32, #tpu.memory_space<vmem>>, vector<8x384xf32>
    %43 = arith.addf %41, %42 : vector<8x384xf32>
    %c160 = arith.constant 160 : index
    %c8_9 = arith.constant 8 : index
    %44 = vector.load %arg5[%c160, %c8_9] : memref<216x584xf32, #tpu.memory_space<vmem>>, vector<8x384xf32>
    %45 = arith.addf %43, %44 : vector<8x384xf32>
    %c168 = arith.constant 168 : index
    %c96_10 = arith.constant 96 : index
    %46 = vector.load %arg5[%c168, %c96_10] : memref<216x584xf32, #tpu.memory_space<vmem>>, vector<8x384xf32>
    %47 = arith.addf %45, %46 : vector<8x384xf32>
    %c176 = arith.constant 176 : index
    %c100_11 = arith.constant 100 : index
    %48 = vector.load %arg5[%c176, %c100_11] : memref<216x584xf32, #tpu.memory_space<vmem>>, vector<8x384xf32>
    %49 = arith.addf %47, %48 : vector<8x384xf32>
    %c184 = arith.constant 184 : index
    %c104_12 = arith.constant 104 : index
    %50 = vector.load %arg5[%c184, %c104_12] : memref<216x584xf32, #tpu.memory_space<vmem>>, vector<8x384xf32>
    %51 = arith.addf %49, %50 : vector<8x384xf32>
    %c192 = arith.constant 192 : index
    %c192_13 = arith.constant 192 : index
    %52 = vector.load %arg5[%c192, %c192_13] : memref<216x584xf32, #tpu.memory_space<vmem>>, vector<8x384xf32>
    %53 = arith.addf %51, %52 : vector<8x384xf32>
    %c200 = arith.constant 200 : index
    %c196 = arith.constant 196 : index
    %54 = vector.load %arg5[%c200, %c196] : memref<216x584xf32, #tpu.memory_space<vmem>>, vector<8x384xf32>
    %55 = arith.addf %53, %54 : vector<8x384xf32>
    %c208 = arith.constant 208 : index
    %c200_14 = arith.constant 200 : index
    %56 = vector.load %arg5[%c208, %c200_14] : memref<216x584xf32, #tpu.memory_space<vmem>>, vector<8x384xf32>
    %57 = arith.addf %55, %56 : vector<8x384xf32>
    %c0_15 = arith.constant 0 : index
    %c0_16 = arith.constant 0 : index
    %58 = vector.load %arg3[%c0_15, %c0_16] : memref<8x1xf32, #tpu.memory_space<vmem>>, vector<8x1xf32>
    %59 = vector.broadcast %58 : vector<8x1xf32> to vector<8x384xf32>
    %60 = arith.addf %57, %59 : vector<8x384xf32>
    %c0_17 = arith.constant 0 : index
    %c0_18 = arith.constant 0 : index
    %c0_19 = arith.constant 0 : index
    %61 = vector.load %arg4[%c0_17, %c0_18, %c0_19] : memref<1x8x384xf32, #tpu.memory_space<vmem>>, vector<1x8x384xf32>
    %62 = vector.shape_cast %61 : vector<1x8x384xf32> to vector<8x384xf32>
    %63 = vector.shape_cast %60 : vector<8x384xf32> to vector<1x8x384xf32>
    tpu.vector_store %arg4[%c0_17, %c0_18, %c0_19], %63 {strides = array<i32>} : memref<1x8x384xf32, #tpu.memory_space<vmem>>, vector<1x8x384xf32>,
    return
  }
  func.func @transform_0(%arg0: i32) -> (i32, i32, i32) {
    %c0_i32 = arith.constant 0 : i32
    %c0_i32_0 = arith.constant 0 : i32
    %c0_i32_1 = arith.constant 0 : i32
    return %arg0, %c0_i32, %c0_i32_0 : i32, i32, i32
  }
  func.func @transform_1(%arg0: i32) -> (i32, i32) {
    %c0_i32 = arith.constant 0 : i32
    %c0_i32_0 = arith.constant 0 : i32
    %c0_i32_1 = arith.constant 0 : i32
    return %c0_i32, %c0_i32_0 : i32, i32
  }
  func.func @transform_2(%arg0: i32) -> (i32, i32) {
    %c0_i32 = arith.constant 0 : i32
    %c0_i32_0 = arith.constant 0 : i32
    %c0_i32_1 = arith.constant 0 : i32
    return %c0_i32, %c0_i32_0 : i32, i32
  }
  func.func @transform_3(%arg0: i32) -> (i32, i32, i32) {
    %c0_i32 = arith.constant 0 : i32
    %c0_i32_0 = arith.constant 0 : i32
    %c0_i32_1 = arith.constant 0 : i32
    return %arg0, %c0_i32, %c0_i32_0 : i32, i32, i32
  }
}

</mosaic_0001>

<llo_original>
// kernel: tpu_custom_call.1
$region0: #{tpu_custom_call.1}
  #allocation0 [shape = 'u32[]', space=smem, size = 0x4, offset = 0x4, fixed_abs, tag = 'smem constant byte address 0x4 - core index']
  #allocation1 [shape = 'u32[144,128]{1,0:T(1,128)}', space=vmem, size = 0x12000, scoped, tag = 'internal scratch']
  #allocation2 [shape = 'f32[216,584]{1,0:T(8,128)}', space=vmem, size = 0x87000, scoped, tag = 'scratch operand']
  %s0 = inlined_call_operand.vmem [shape: bf16[2,256,584], index: 0, kind: input, shape index: {}]
  %s1 = inlined_call_operand.vmem [shape: bf16[216,256], index: 1, kind: input, shape index: {}]
  %s2 = inlined_call_operand.vmem [shape: f32[8,1], index: 2, kind: input, shape index: {}]
  %s3 = inlined_call_operand.hbm [shape: f32[2,8,384], index: 3, kind: output, shape index: {}]
  %s4 = sld [smem:[#allocation0]]
  $region45: #{tpu_custom_call.1} parent=0
    _
  %s6 = ssub.s32 1, %s4
  %s7 = scalar_select 0, %s6, %s4
  $region1: #{tpu_custom_call.1} parent=0
    #allocation3 [shape = 'u8[24576]{0}', space=vmem, size = 0x6000, scoped, tag = 'output window, operand 0']
    #allocation4 [shape = 's32[2]{0}', space=sflag, size = 0x8, scoped, tag = 'scoped memory for tpu_custom_call.1']
    %8 = vsyncpa [#allocation4], 0
    %s9 = scalar_lea.sflag [#allocation4], 1
    %10 = vsyncpa %s9, 0
    loop: start=0, step=1, limit=4
    $region2: #{tpu_custom_call.1} parent=1 // loop_pre_header
      _
    $region3: #{tpu_custom_call.1} parent=1 // loop_header
      %s12 = sphi 0, %s16
      %p13 = scmp.ge.s32.totalorder %s12, 4
      %s22 = sphi 0, %s24
      %s25 = sphi 0, %s22
      %s26 = sphi 0, %s25
      %s42 = sphi 0, %s26
      %s46 = sphi 0, %s46
      %s48 = sphi 0, %s46
      %s49 = sphi 0, %s48
      %s63 = sphi 0, %s49
      %s67 = sphi 0, %s67
      %s69 = sphi 0, %s67
      %s70 = sphi 0, %s69
      %s84 = sphi 0, %s70
      %s90 = sphi 0, %s92
      %s93 = sphi 0, %s90
      %s94 = sphi 0, %s93
      %s110 = sphi 0, %s94
    $region4: #{tpu_custom_call.1} parent=1 // loop_header_branch
      %15 = sbr.rel (%p13) target = $region8
    $region5: #{tpu_custom_call.1} parent=1 // loop_body
      %s17 = ssub.s32 %s12, 1
      %s18 = ssub.s32 %s12, 2
      %s19 = sadd.s32 %s12, 1
      %s20 = ssub.s32 %s12, %s19
      %p21 = scmp.eq.s32.totalorder %s20, 0
      %s23 = sadd.s32 %s22, 1
      %s24 = scalar_select %p21, %s22, %s23
      %p27 = pneg %p21
      %p28 = scmp.eq.s32.totalorder %s12, 1
      %p29 = por %p27, %p28
      %p30 = scmp.ne.s32.totalorder %s22, %s25
      %p31 = scmp.eq.s32.totalorder %s12, 0
      %p32 = por %p30, %p31
      %p33 = scmp.ne.s32.totalorder %s22, %s25
      %p34 = scmp.eq.s32.totalorder %s17, 1
      %p35 = por %p33, %p34
      %p36 = scmp.ne.s32.totalorder %s25, %s26
      %p37 = scmp.eq.s32.totalorder %s17, 0
      %p38 = por %p36, %p37
      %p39 = scmp.ne.s32.totalorder %s25, %s26
      %p40 = scmp.eq.s32.totalorder %s18, 1
      %p41 = por %p39, %p40
      %p43 = scmp.ne.s32.totalorder %s26, %s42
      %p44 = scmp.eq.s32.totalorder %s18, 0
      %p45 = por %p43, %p44
      %s47 = sadd.s32 %s46, 1
      %p50 = scmp.eq.s32.totalorder %s12, 1
      %p51 = scmp.ne.s32.totalorder %s46, %s48
      %p52 = scmp.eq.s32.totalorder %s12, 0
      %p53 = por %p51, %p52
      %p54 = scmp.ne.s32.totalorder %s46, %s48
      %p55 = scmp.eq.s32.totalorder %s17, 1
      %p56 = por %p54, %p55
      %p57 = scmp.ne.s32.totalorder %s48, %s49
      %p58 = scmp.eq.s32.totalorder %s17, 0
      %p59 = por %p57, %p58
      %p60 = scmp.ne.s32.totalorder %s48, %s49
      %p61 = scmp.eq.s32.totalorder %s18, 1
      %p62 = por %p60, %p61
      %p64 = scmp.ne.s32.totalorder %s49, %s63
      %p65 = scmp.eq.s32.totalorder %s18, 0
      %p66 = por %p64, %p65
      %s68 = sadd.s32 %s67, 1
      %p71 = scmp.eq.s32.totalorder %s12, 1
      %p72 = scmp.ne.s32.totalorder %s67, %s69
      %p73 = scmp.eq.s32.totalorder %s12, 0
      %p74 = por %p72, %p73
      %p75 = scmp.ne.s32.totalorder %s67, %s69
      %p76 = scmp.eq.s32.totalorder %s17, 1
      %p77 = por %p75, %p76
      %p78 = scmp.ne.s32.totalorder %s69, %s70
      %p79 = scmp.eq.s32.totalorder %s17, 0
      %p80 = por %p78, %p79
      %p81 = scmp.ne.s32.totalorder %s69, %s70
      %p82 = scmp.eq.s32.totalorder %s18, 1
      %p83 = por %p81, %p82
      %p85 = scmp.ne.s32.totalorder %s70, %s84
      %p86 = scmp.eq.s32.totalorder %s18, 0
      %p87 = por %p85, %p86
      %s88 = ssub.s32 %s12, %s19
      %p89 = scmp.eq.s32.totalorder %s88, 0
      %s91 = sadd.s32 %s90, 1
      %s92 = scalar_select %p89, %s90, %s91
      %p95 = pneg %p89
      %p96 = scmp.eq.s32.totalorder %s12, 1
      %p97 = por %p95, %p96
      %p98 = scmp.ne.s32.totalorder %s90, %s93
      %p99 = scmp.eq.s32.totalorder %s12, 0
      %p100 = por %p98, %p99
      %p101 = scmp.ne.s32.totalorder %s90, %s93
      %p102 = scmp.eq.s32.totalorder %s17, 1
      %p103 = por %p101, %p102
      %p104 = scmp.ne.s32.totalorder %s93, %s94
      %p105 = scmp.eq.s32.totalorder %s17, 0
      %p106 = por %p104, %p105
      %p107 = scmp.ne.s32.totalorder %s93, %s94
      %p108 = scmp.eq.s32.totalorder %s18, 1
      %p109 = por %p107, %p108
      %p111 = scmp.ne.s32.totalorder %s94, %s110
      %p112 = scmp.eq.s32.totalorder %s18, 0
      %p113 = por %p111, %p112
      %p114 = scmp.le.s32.totalorder 1, %s12
      %p115 = scmp.lt.s32.totalorder %s12, 3
      %p116 = pnand %p114, %p115
      %p117 = pneg %p116
      // Predicated region
      $region9: #{tpu_custom_call.1} parent=5 // pred_check
        _
      $region10: #{tpu_custom_call.1} parent=5 // pred_check_branch
        %119 = sbr.rel (%p116) target = $region12
      $region11: #{tpu_custom_call.1} parent=5 // pred_region
        %s120 = ssub.s32 %s12, 1
        // Predicated region
        $region13: #{tpu_custom_call.1} parent=11 // pred_check
          %p121 = pneg %p59
        $region14: #{tpu_custom_call.1} parent=11 // pred_check_branch
          %123 = sbr.rel (%p121) target = $region16
        $region15: #{tpu_custom_call.1} parent=11 // pred_region
          _
        $region16: #{tpu_custom_call.1} parent=11 // pred_fallthru
          _
        // Predicated region
        $region17: #{tpu_custom_call.1} parent=11 // pred_check
          %p124 = pneg %p80
        $region18: #{tpu_custom_call.1} parent=11 // pred_check_branch
          %126 = sbr.rel (%p124) target = $region20
        $region19: #{tpu_custom_call.1} parent=11 // pred_region
          _
        $region20: #{tpu_custom_call.1} parent=11 // pred_fallthru
          _
      $region12: #{tpu_custom_call.1} parent=5 // pred_fallthru
        _
      %p127 = scmp.lt.s32.totalorder %s12, 2
      // Predicated region
      $region21: #{tpu_custom_call.1} parent=5 // pred_check
        %p128 = pneg %p127
      $region22: #{tpu_custom_call.1} parent=5 // pred_check_branch
        %130 = sbr.rel (%p128) target = $region24
      $region23: #{tpu_custom_call.1} parent=5 // pred_region
        // Predicated region
        $region25: #{tpu_custom_call.1} parent=23 // pred_check
          %p131 = pneg %p32
        $region26: #{tpu_custom_call.1} parent=23 // pred_check_branch
          %133 = sbr.rel (%p131) target = $region28
        $region27: #{tpu_custom_call.1} parent=23 // pred_region
          %p134 = scmp.lt.s32.totalorder %s12, 1
          %s135 = scalar_select %p134, %s12, 1
          %s136 = smul.addr %s135, 160
          %s137 = smul.addr %s136, 4
          %s138 = scalar_lea.vmem %s0, %s137
        $region28: #{tpu_custom_call.1} parent=23 // pred_fallthru
          _
      $region24: #{tpu_custom_call.1} parent=5 // pred_fallthru
        _
      %p139 = scmp.le.s32.totalorder 1, %s12
      %p140 = scmp.lt.s32.totalorder %s12, 3
      %p141 = pnand %p139, %p140
      %p142 = pneg %p141
      // Predicated region
      $region29: #{tpu_custom_call.1} parent=5 // pred_check
        _
      $region30: #{tpu_custom_call.1} parent=5 // pred_check_branch
        %144 = sbr.rel (%p141) target = $region32
      $region31: #{tpu_custom_call.1} parent=5 // pred_region
        %s145 = ssub.s32 %s12, 1
        %p146 = scmp.lt.s32.totalorder %s17, 1
        %s147 = scalar_select %p146, %s17, 1
        %s148 = smul.addr %s147, 160
        %s149 = smul.addr %s148, 4
        %s150 = scalar_lea.vmem %s0, %s149
        %p151 = pneg %p38
        %p152 = pneg %p35
        %p153 = pneg %p59
        %p154 = pneg %p56
        %p155 = pneg %p80
        %p156 = pneg %p77
        %p157 = pneg %p106
        %p158 = pneg %p103
        %s159 = sand.u32 %s93, 1
        %s160 = scalar_lea.sflag [#allocation4], %s159
        %s161 = sand.u32 %s93, 1
        %s162 = smul.addr %s161, 24
        %s163 = scalar_lea.vmem [#allocation3], %s162
        %p164 = scmp.lt.s32.totalorder %s17, 1
        %s165 = scalar_select %p164, %s17, 1
        %s166 = smul.addr %s165, 160
        %s167 = smul.addr %s166, 4
        %s168 = scalar_lea.vmem %s0, %s167
        %v170 = vld [vmem:[%s1] sm:$0xff]
        %v171 = vld [vmem:[%s1 + $0x8] sm:$0xff]
        %v172 = vld [vmem:[%s1 + $0x10] sm:$0xff]
        %v173 = vld [vmem:[%s1 + $0x18] sm:$0xff]
        %v174 = vld [vmem:[%s1 + $0x20] sm:$0xff]
        %v175 = vld [vmem:[%s1 + $0x28] sm:$0xff]
        %v176 = vld [vmem:[%s1 + $0x30] sm:$0xff]
        %v177 = vld [vmem:[%s1 + $0x38] sm:$0xff]
        %v178 = vld [vmem:[%s1 + $0x40] sm:$0xff]
        %v179 = vld [vmem:[%s1 + $0x48] sm:$0xff]
        %v180 = vld [vmem:[%s1 + $0x50] sm:$0xff]
        %v181 = vld [vmem:[%s1 + $0x58] sm:$0xff]
        %v182 = vld [vmem:[%s1 + $0x60] sm:$0xff]
        %v183 = vld [vmem:[%s1 + $0x68] sm:$0xff]
        %v184 = vld [vmem:[%s1 + $0x70] sm:$0xff]
        %v185 = vld [vmem:[%s1 + $0x78] sm:$0xff]
        %v186 = vld [vmem:[%s1 + $0x80] sm:$0xff]
        %v187 = vld [vmem:[%s1 + $0x88] sm:$0xff]
        %v188 = vld [vmem:[%s1 + $0x90] sm:$0xff]
        %v189 = vld [vmem:[%s1 + $0x98] sm:$0xff]
        %v190 = vld [vmem:[%s1 + $0xa0] sm:$0xff]
        %v191 = vld [vmem:[%s1 + $0xa8] sm:$0xff]
        %v192 = vld [vmem:[%s1 + $0xb0] sm:$0xff]
        %v193 = vld [vmem:[%s1 + $0xb8] sm:$0xff]
        %v194 = vld [vmem:[%s1 + $0xc0] sm:$0xff]
        %v195 = vld [vmem:[%s1 + $0xc8] sm:$0xff]
        %v196 = vld [vmem:[%s1 + $0xd0] sm:$0xff]
        %v197 = vld [vmem:[%s168] sm:$0xff]
        %v198 = vld [vmem:[%s168 + $0x8] sm:$0xff]
        %v199 = vld [vmem:[%s168 + $0x10] sm:$0xf]
        %v200 = vld [vmem:[%s168 + $0x14] sm:$0xff]
        %v201 = vld [vmem:[%s168 + $0x1c] sm:$0xff]
        %v202 = vld [vmem:[%s168 + $0x24] sm:$0xf]
        %v203 = vld [vmem:[%s168 + $0x28] sm:$0xff]
        %v204 = vld [vmem:[%s168 + $0x30] sm:$0xff]
        %v205 = vld [vmem:[%s168 + $0x38] sm:$0xf]
        %v206 = vld [vmem:[%s168 + $0x3c] sm:$0xff]
        %v207 = vld [vmem:[%s168 + $0x44] sm:$0xff]
        %v208 = vld [vmem:[%s168 + $0x4c] sm:$0xf]
        %v209 = vld [vmem:[%s168 + $0x50] sm:$0xff]
        %v210 = vld [vmem:[%s168 + $0x58] sm:$0xff]
        %v211 = vld [vmem:[%s168 + $0x60] sm:$0xf]
        %v212 = vld [vmem:[%s168 + $0x64] sm:$0xff]
        %v213 = vld [vmem:[%s168 + $0x6c] sm:$0xff]
        %v214 = vld [vmem:[%s168 + $0x74] sm:$0xf]
        %v215 = vld [vmem:[%s168 + $0x78] sm:$0xff]
        %v216 = vld [vmem:[%s168 + $0x80] sm:$0xff]
        %v217 = vld [vmem:[%s168 + $0x88] sm:$0xf]
        %v218 = vld [vmem:[%s168 + $0x8c] sm:$0xff]
        %v219 = vld [vmem:[%s168 + $0x94] sm:$0xff]
        %v220 = vld [vmem:[%s168 + $0x9c] sm:$0xf]
        %v221 = vld [vmem:[%s168 + $0xa0] sm:$0xff]
        %v222 = vld [vmem:[%s168 + $0xa8] sm:$0xff]
        %v223 = vld [vmem:[%s168 + $0xb0] sm:$0xf]
        %v224 = vld [vmem:[%s168 + $0xb4] sm:$0xff]
        %v225 = vld [vmem:[%s168 + $0xbc] sm:$0xff]
        %v226 = vld [vmem:[%s168 + $0xc4] sm:$0xf]
        %v227 = vld [vmem:[%s168 + $0xc8] sm:$0xff]
        %v228 = vld [vmem:[%s168 + $0xd0] sm:$0xff]
        %v229 = vld [vmem:[%s168 + $0xd8] sm:$0xf]
        %v230 = vld [vmem:[%s168 + $0xdc] sm:$0xff]
        %v231 = vld [vmem:[%s168 + $0xe4] sm:$0xff]
        %v232 = vld [vmem:[%s168 + $0xec] sm:$0xf]
        %v233 = vld [vmem:[%s168 + $0xf0] sm:$0xff]
        %v234 = vld [vmem:[%s168 + $0xf8] sm:$0xff]
        %v235 = vld [vmem:[%s168 + $0x100] sm:$0xf]
        %v236 = vld [vmem:[%s168 + $0x104] sm:$0xff]
        %v237 = vld [vmem:[%s168 + $0x10c] sm:$0xff]
        %v238 = vld [vmem:[%s168 + $0x114] sm:$0xf]
        %v239 = vld [vmem:[%s168 + $0x118] sm:$0xff]
        %v240 = vld [vmem:[%s168 + $0x120] sm:$0xff]
        %v241 = vld [vmem:[%s168 + $0x128] sm:$0xf]
        %v242 = vld [vmem:[%s168 + $0x12c] sm:$0xff]
        %v243 = vld [vmem:[%s168 + $0x134] sm:$0xff]
        %v244 = vld [vmem:[%s168 + $0x13c] sm:$0xf]
        %v245 = vld [vmem:[%s168 + $0x140] sm:$0xff]
        %v246 = vld [vmem:[%s168 + $0x148] sm:$0xff]
        %v247 = vld [vmem:[%s168 + $0x150] sm:$0xf]
        %v248 = vld [vmem:[%s168 + $0x154] sm:$0xff]
        %v249 = vld [vmem:[%s168 + $0x15c] sm:$0xff]
        %v250 = vld [vmem:[%s168 + $0x164] sm:$0xf]
        %v251 = vld [vmem:[%s168 + $0x168] sm:$0xff]
        %v252 = vld [vmem:[%s168 + $0x170] sm:$0xff]
        %v253 = vld [vmem:[%s168 + $0x178] sm:$0xf]
        %v254 = vld [vmem:[%s168 + $0x17c] sm:$0xff]
        %v255 = vld [vmem:[%s168 + $0x184] sm:$0xff]
        %v256 = vld [vmem:[%s168 + $0x18c] sm:$0xf]
        %v257 = vld [vmem:[%s168 + $0x190] sm:$0xff]
        %v258 = vld [vmem:[%s168 + $0x198] sm:$0xff]
        %v259 = vld [vmem:[%s168 + $0x1a0] sm:$0xf]
        %v260 = vld [vmem:[%s168 + $0x1a4] sm:$0xff]
        %v261 = vld [vmem:[%s168 + $0x1ac] sm:$0xff]
        %v262 = vld [vmem:[%s168 + $0x1b4] sm:$0xf]
        %v263 = vld [vmem:[%s168 + $0x1b8] sm:$0xff]
        %v264 = vld [vmem:[%s168 + $0x1c0] sm:$0xff]
        %v265 = vld [vmem:[%s168 + $0x1c8] sm:$0xf]
        %v266 = vld [vmem:[%s168 + $0x1cc] sm:$0xff]
        %v267 = vld [vmem:[%s168 + $0x1d4] sm:$0xff]
        %v268 = vld [vmem:[%s168 + $0x1dc] sm:$0xf]
        %v269 = vld [vmem:[%s168 + $0x1e0] sm:$0xff]
        %v270 = vld [vmem:[%s168 + $0x1e8] sm:$0xff]
        %v271 = vld [vmem:[%s168 + $0x1f0] sm:$0xf]
        %v272 = vld [vmem:[%s168 + $0x1f4] sm:$0xff]
        %v273 = vld [vmem:[%s168 + $0x1fc] sm:$0xff]
        %v274 = vld [vmem:[%s168 + $0x204] sm:$0xf]
        %v275 = vld [vmem:[%s168 + $0x208] sm:$0xff]
        %v276 = vld [vmem:[%s168 + $0x210] sm:$0xff]
        %v277 = vld [vmem:[%s168 + $0x218] sm:$0xf]
        %v278 = vld [vmem:[%s168 + $0x21c] sm:$0xff]
        %v279 = vld [vmem:[%s168 + $0x224] sm:$0xff]
        %v280 = vld [vmem:[%s168 + $0x22c] sm:$0xf]
        %v281 = vld [vmem:[%s168 + $0x230] sm:$0xff]
        %v282 = vld [vmem:[%s168 + $0x238] sm:$0xff]
        %v283 = vld [vmem:[%s168 + $0x240] sm:$0xf]
        %v284 = vld [vmem:[%s168 + $0x244] sm:$0xff]
        %v285 = vld [vmem:[%s168 + $0x24c] sm:$0xff]
        %v286 = vld [vmem:[%s168 + $0x254] sm:$0xf]
        %v287 = vld [vmem:[%s168 + $0x258] sm:$0xff]
        %v288 = vld [vmem:[%s168 + $0x260] sm:$0xff]
        %v289 = vld [vmem:[%s168 + $0x268] sm:$0xf]
        %v290 = vld [vmem:[%s168 + $0x26c] sm:$0xff]
        %v291 = vld [vmem:[%s168 + $0x274] sm:$0xff]
        %v292 = vld [vmem:[%s168 + $0x27c] sm:$0xf]
        %v320 = vunpack.c.l.b16 %v170
        %v321 = vunpack.c.h.b16 %v170
        %v322 = vunpack.c.l.b16 %v171
        %v323 = vunpack.c.h.b16 %v171
        %v324 = vunpack.c.l.b16 %v172
        %v325 = vunpack.c.h.b16 %v172
        %v326 = vunpack.c.l.b16 %v173
        %v327 = vunpack.c.h.b16 %v173
        %v328 = vunpack.c.l.b16 %v174
        %v329 = vunpack.c.h.b16 %v174
        %v330 = vunpack.c.l.b16 %v175
        %v331 = vunpack.c.h.b16 %v175
        %v332 = vunpack.c.l.b16 %v176
        %v333 = vunpack.c.h.b16 %v176
        %v334 = vunpack.c.l.b16 %v177
        %v335 = vunpack.c.h.b16 %v177
        %v336 = vunpack.c.l.b16 %v178
        %v337 = vunpack.c.h.b16 %v178
        %v338 = vunpack.c.l.b16 %v179
        %v339 = vunpack.c.h.b16 %v179
        %v340 = vunpack.c.l.b16 %v180
        %v341 = vunpack.c.h.b16 %v180
        %v342 = vunpack.c.l.b16 %v181
        %v343 = vunpack.c.h.b16 %v181
        %v344 = vunpack.c.l.b16 %v182
        %v345 = vunpack.c.h.b16 %v182
        %v346 = vunpack.c.l.b16 %v183
        %v347 = vunpack.c.h.b16 %v183
        %v348 = vunpack.c.l.b16 %v184
        %v349 = vunpack.c.h.b16 %v184
        %v350 = vunpack.c.l.b16 %v185
        %v351 = vunpack.c.h.b16 %v185
        %v352 = vunpack.c.l.b16 %v186
        %v353 = vunpack.c.h.b16 %v186
        %v354 = vunpack.c.l.b16 %v187
        %v355 = vunpack.c.h.b16 %v187
        %v356 = vunpack.c.l.b16 %v188
        %v357 = vunpack.c.h.b16 %v188
        %v358 = vunpack.c.l.b16 %v189
        %v359 = vunpack.c.h.b16 %v189
        %v360 = vunpack.c.l.b16 %v190
        %v361 = vunpack.c.h.b16 %v190
        %v362 = vunpack.c.l.b16 %v191
        %v363 = vunpack.c.h.b16 %v191
        %v364 = vunpack.c.l.b16 %v192
        %v365 = vunpack.c.h.b16 %v192
        %v366 = vunpack.c.l.b16 %v193
        %v367 = vunpack.c.h.b16 %v193
        %v368 = vunpack.c.l.b16 %v194
        %v369 = vunpack.c.h.b16 %v194
        %v370 = vunpack.c.l.b16 %v195
        %v371 = vunpack.c.h.b16 %v195
        %v372 = vunpack.c.l.b16 %v196
        %v373 = vunpack.c.h.b16 %v196
        %v374 = vpack.c.b16 %v322, %v320
        %v375 = vpack.c.b16 %v323, %v321
        %v376 = vpack.c.b16 %v326, %v324
        %v377 = vpack.c.b16 %v327, %v325
        %v378 = vpack.c.b16 %v330, %v328
        %v379 = vpack.c.b16 %v331, %v329
        %v380 = vpack.c.b16 %v334, %v332
        %v381 = vpack.c.b16 %v335, %v333
        %v382 = vpack.c.b16 %v338, %v336
        %v383 = vpack.c.b16 %v339, %v337
        %v384 = vpack.c.b16 %v342, %v340
        %v385 = vpack.c.b16 %v343, %v341
        %v386 = vpack.c.b16 %v346, %v344
        %v387 = vpack.c.b16 %v347, %v345
        %v388 = vpack.c.b16 %v350, %v348
        %v389 = vpack.c.b16 %v351, %v349
        %v390 = vpack.c.b16 %v354, %v352
        %v391 = vpack.c.b16 %v355, %v353
        %v392 = vpack.c.b16 %v358, %v356
        %v393 = vpack.c.b16 %v359, %v357
        %v394 = vpack.c.b16 %v362, %v360
        %v395 = vpack.c.b16 %v363, %v361
        %v396 = vpack.c.b16 %v366, %v364
        %v397 = vpack.c.b16 %v367, %v365
        %v398 = vpack.c.b16 %v370, %v368
        %v399 = vpack.c.b16 %v371, %v369
        %v400 = vpack.c.b16 %v372, %v372
        %v401 = vpack.c.b16 %v373, %v373
        %v526 = vunpack.c.l.b16 %v197
        %v527 = vunpack.c.h.b16 %v197
        %v528 = vunpack.c.l.b16 %v198
        %v529 = vunpack.c.h.b16 %v198
        %v530 = vunpack.c.l.b16 %v199
        %v531 = vunpack.c.l.b16 %v200
        %v532 = vunpack.c.h.b16 %v200
        %v533 = vunpack.c.l.b16 %v201
        %v534 = vunpack.c.h.b16 %v201
        %v535 = vunpack.c.l.b16 %v202
        %v536 = vunpack.c.l.b16 %v203
        %v537 = vunpack.c.h.b16 %v203
        %v538 = vunpack.c.l.b16 %v204
        %v539 = vunpack.c.h.b16 %v204
        %v540 = vunpack.c.l.b16 %v205
        %v541 = vunpack.c.l.b16 %v206
        %v542 = vunpack.c.h.b16 %v206
        %v543 = vunpack.c.l.b16 %v207
        %v544 = vunpack.c.h.b16 %v207
        %v545 = vunpack.c.l.b16 %v208
        %v546 = vunpack.c.l.b16 %v209
        %v547 = vunpack.c.h.b16 %v209
        %v548 = vunpack.c.l.b16 %v210
        %v549 = vunpack.c.h.b16 %v210
        %v550 = vunpack.c.l.b16 %v211
        %v551 = vunpack.c.l.b16 %v212
        %v552 = vunpack.c.h.b16 %v212
        %v553 = vunpack.c.l.b16 %v213
        %v554 = vunpack.c.h.b16 %v213
        %v555 = vunpack.c.l.b16 %v214
        %v556 = vunpack.c.l.b16 %v215
        %v557 = vunpack.c.h.b16 %v215
        %v558 = vunpack.c.l.b16 %v216
        %v559 = vunpack.c.h.b16 %v216
        %v560 = vunpack.c.l.b16 %v217
        %v561 = vunpack.c.l.b16 %v218
        %v562 = vunpack.c.h.b16 %v218
        %v563 = vunpack.c.l.b16 %v219
        %v564 = vunpack.c.h.b16 %v219
        %v565 = vunpack.c.l.b16 %v220
        %v566 = vunpack.c.l.b16 %v221
        %v567 = vunpack.c.h.b16 %v221
        %v568 = vunpack.c.l.b16 %v222
        %v569 = vunpack.c.h.b16 %v222
        %v570 = vunpack.c.l.b16 %v223
        %v571 = vunpack.c.l.b16 %v224
        %v572 = vunpack.c.h.b16 %v224
        %v573 = vunpack.c.l.b16 %v225
        %v574 = vunpack.c.h.b16 %v225
        %v575 = vunpack.c.l.b16 %v226
        %v576 = vunpack.c.l.b16 %v227
        %v577 = vunpack.c.h.b16 %v227
        %v578 = vunpack.c.l.b16 %v228
        %v579 = vunpack.c.h.b16 %v228
        %v580 = vunpack.c.l.b16 %v229
        %v581 = vunpack.c.l.b16 %v230
        %v582 = vunpack.c.h.b16 %v230
        %v583 = vunpack.c.l.b16 %v231
        %v584 = vunpack.c.h.b16 %v231
        %v585 = vunpack.c.l.b16 %v232
        %v586 = vunpack.c.l.b16 %v233
        %v587 = vunpack.c.h.b16 %v233
        %v588 = vunpack.c.l.b16 %v234
        %v589 = vunpack.c.h.b16 %v234
        %v590 = vunpack.c.l.b16 %v235
        %v591 = vunpack.c.l.b16 %v236
        %v592 = vunpack.c.h.b16 %v236
        %v593 = vunpack.c.l.b16 %v237
        %v594 = vunpack.c.h.b16 %v237
        %v595 = vunpack.c.l.b16 %v238
        %v596 = vunpack.c.l.b16 %v239
        %v597 = vunpack.c.h.b16 %v239
        %v598 = vunpack.c.l.b16 %v240
        %v599 = vunpack.c.h.b16 %v240
        %v600 = vunpack.c.l.b16 %v241
        %v601 = vunpack.c.l.b16 %v242
        %v602 = vunpack.c.h.b16 %v242
        %v603 = vunpack.c.l.b16 %v243
        %v604 = vunpack.c.h.b16 %v243
        %v605 = vunpack.c.l.b16 %v244
        %v606 = vunpack.c.l.b16 %v245
        %v607 = vunpack.c.h.b16 %v245
        %v608 = vunpack.c.l.b16 %v246
        %v609 = vunpack.c.h.b16 %v246
        %v610 = vunpack.c.l.b16 %v247
        %v611 = vunpack.c.l.b16 %v248
        %v612 = vunpack.c.h.b16 %v248
        %v613 = vunpack.c.l.b16 %v249
        %v614 = vunpack.c.h.b16 %v249
        %v615 = vunpack.c.l.b16 %v250
        %v616 = vunpack.c.l.b16 %v251
        %v617 = vunpack.c.h.b16 %v251
        %v618 = vunpack.c.l.b16 %v252
        %v619 = vunpack.c.h.b16 %v252
        %v620 = vunpack.c.l.b16 %v253
        %v621 = vunpack.c.l.b16 %v254
        %v622 = vunpack.c.h.b16 %v254
        %v623 = vunpack.c.l.b16 %v255
        %v624 = vunpack.c.h.b16 %v255
        %v625 = vunpack.c.l.b16 %v256
        %v626 = vunpack.c.l.b16 %v257
        %v627 = vunpack.c.h.b16 %v257
        %v628 = vunpack.c.l.b16 %v258
        %v629 = vunpack.c.h.b16 %v258
        %v630 = vunpack.c.l.b16 %v259
        %v631 = vunpack.c.l.b16 %v260
        %v632 = vunpack.c.h.b16 %v260
        %v633 = vunpack.c.l.b16 %v261
        %v634 = vunpack.c.h.b16 %v261
        %v635 = vunpack.c.l.b16 %v262
        %v636 = vunpack.c.l.b16 %v263
        %v637 = vunpack.c.h.b16 %v263
        %v638 = vunpack.c.l.b16 %v264
        %v639 = vunpack.c.h.b16 %v264
        %v640 = vunpack.c.l.b16 %v265
        %v641 = vunpack.c.l.b16 %v266
        %v642 = vunpack.c.h.b16 %v266
        %v643 = vunpack.c.l.b16 %v267
        %v644 = vunpack.c.h.b16 %v267
        %v645 = vunpack.c.l.b16 %v268
        %v646 = vunpack.c.l.b16 %v269
        %v647 = vunpack.c.h.b16 %v269
        %v648 = vunpack.c.l.b16 %v270
        %v649 = vunpack.c.h.b16 %v270
        %v650 = vunpack.c.l.b16 %v271
        %v651 = vunpack.c.l.b16 %v272
        %v652 = vunpack.c.h.b16 %v272
        %v653 = vunpack.c.l.b16 %v273
        %v654 = vunpack.c.h.b16 %v273
        %v655 = vunpack.c.l.b16 %v274
        %v656 = vunpack.c.l.b16 %v275
        %v657 = vunpack.c.h.b16 %v275
        %v658 = vunpack.c.l.b16 %v276
        %v659 = vunpack.c.h.b16 %v276
        %v660 = vunpack.c.l.b16 %v277
        %v661 = vunpack.c.l.b16 %v278
        %v662 = vunpack.c.h.b16 %v278
        %v663 = vunpack.c.l.b16 %v279
        %v664 = vunpack.c.h.b16 %v279
        %v665 = vunpack.c.l.b16 %v280
        %v666 = vunpack.c.l.b16 %v281
        %v667 = vunpack.c.h.b16 %v281
        %v668 = vunpack.c.l.b16 %v282
        %v669 = vunpack.c.h.b16 %v282
        %v670 = vunpack.c.l.b16 %v283
        %v671 = vunpack.c.l.b16 %v284
        %v672 = vunpack.c.h.b16 %v284
        %v673 = vunpack.c.l.b16 %v285
        %v674 = vunpack.c.h.b16 %v285
        %v675 = vunpack.c.l.b16 %v286
        %v676 = vunpack.c.l.b16 %v287
        %v677 = vunpack.c.h.b16 %v287
        %v678 = vunpack.c.l.b16 %v288
        %v679 = vunpack.c.h.b16 %v288
        %v680 = vunpack.c.l.b16 %v289
        %v681 = vunpack.c.l.b16 %v290
        %v682 = vunpack.c.h.b16 %v290
        %v683 = vunpack.c.l.b16 %v291
        %v684 = vunpack.c.h.b16 %v291
        %v685 = vunpack.c.l.b16 %v292
        %v686 = vpack.c.b16 %v531, %v526
        %v687 = vpack.c.b16 %v532, %v527
        %v688 = vpack.c.b16 %v533, %v528
        %v689 = vpack.c.b16 %v534, %v529
        %v690 = vpack.c.b16 %v535, %v530
        %v691 = vpack.c.b16 %v541, %v536
        %v692 = vpack.c.b16 %v542, %v537
        %v693 = vpack.c.b16 %v543, %v538
        %v694 = vpack.c.b16 %v544, %v539
        %v695 = vpack.c.b16 %v545, %v540
        %v696 = vpack.c.b16 %v551, %v546
        %v697 = vpack.c.b16 %v552, %v547
        %v698 = vpack.c.b16 %v553, %v548
        %v699 = vpack.c.b16 %v554, %v549
        %v700 = vpack.c.b16 %v555, %v550
        %v701 = vpack.c.b16 %v561, %v556
        %v702 = vpack.c.b16 %v562, %v557
        %v703 = vpack.c.b16 %v563, %v558
        %v704 = vpack.c.b16 %v564, %v559
        %v705 = vpack.c.b16 %v565, %v560
        %v706 = vpack.c.b16 %v571, %v566
        %v707 = vpack.c.b16 %v572, %v567
        %v708 = vpack.c.b16 %v573, %v568
        %v709 = vpack.c.b16 %v574, %v569
        %v710 = vpack.c.b16 %v575, %v570
        %v711 = vpack.c.b16 %v581, %v576
        %v712 = vpack.c.b16 %v582, %v577
        %v713 = vpack.c.b16 %v583, %v578
        %v714 = vpack.c.b16 %v584, %v579
        %v715 = vpack.c.b16 %v585, %v580
        %v716 = vpack.c.b16 %v591, %v586
        %v717 = vpack.c.b16 %v592, %v587
        %v718 = vpack.c.b16 %v593, %v588
        %v719 = vpack.c.b16 %v594, %v589
        %v720 = vpack.c.b16 %v595, %v590
        %v721 = vpack.c.b16 %v601, %v596
        %v722 = vpack.c.b16 %v602, %v597
        %v723 = vpack.c.b16 %v603, %v598
        %v724 = vpack.c.b16 %v604, %v599
        %v725 = vpack.c.b16 %v605, %v600
        %v726 = vpack.c.b16 %v611, %v606
        %v727 = vpack.c.b16 %v612, %v607
        %v728 = vpack.c.b16 %v613, %v608
        %v729 = vpack.c.b16 %v614, %v609
        %v730 = vpack.c.b16 %v615, %v610
        %v731 = vpack.c.b16 %v621, %v616
        %v732 = vpack.c.b16 %v622, %v617
        %v733 = vpack.c.b16 %v623, %v618
        %v734 = vpack.c.b16 %v624, %v619
        %v735 = vpack.c.b16 %v625, %v620
        %v736 = vpack.c.b16 %v631, %v626
        %v737 = vpack.c.b16 %v632, %v627
        %v738 = vpack.c.b16 %v633, %v628
        %v739 = vpack.c.b16 %v634, %v629
        %v740 = vpack.c.b16 %v635, %v630
        %v741 = vpack.c.b16 %v641, %v636
        %v742 = vpack.c.b16 %v642, %v637
        %v743 = vpack.c.b16 %v643, %v638
        %v744 = vpack.c.b16 %v644, %v639
        %v745 = vpack.c.b16 %v645, %v640
        %v746 = vpack.c.b16 %v651, %v646
        %v747 = vpack.c.b16 %v652, %v647
        %v748 = vpack.c.b16 %v653, %v648
        %v749 = vpack.c.b16 %v654, %v649
        %v750 = vpack.c.b16 %v655, %v650
        %v751 = vpack.c.b16 %v661, %v656
        %v752 = vpack.c.b16 %v662, %v657
        %v753 = vpack.c.b16 %v663, %v658
        %v754 = vpack.c.b16 %v664, %v659
        %v755 = vpack.c.b16 %v665, %v660
        %v756 = vpack.c.b16 %v671, %v666
        %v757 = vpack.c.b16 %v672, %v667
        %v758 = vpack.c.b16 %v673, %v668
        %v759 = vpack.c.b16 %v674, %v669
        %v760 = vpack.c.b16 %v675, %v670
        %v761 = vpack.c.b16 %v681, %v676
        %v762 = vpack.c.b16 %v682, %v677
        %v763 = vpack.c.b16 %v683, %v678
        %v764 = vpack.c.b16 %v684, %v679
        %v765 = vpack.c.b16 %v685, %v680
        %846 = vmatprep.subr.bf16.mxu0 %v687
        %847 = vmatpush1.bf16.msra.mxu0 %v686
        %848 = vmatprep.subr.bf16.mxu0 %v692
        %849 = vmatpush1.bf16.msra.mxu0 %v691
        %850 = vmatprep.subr.bf16.mxu0 %v697
        %851 = vmatpush1.bf16.msra.mxu0 %v696
        %852 = vmatprep.subr.bf16.mxu0 %v702
        %853 = vmatpush1.bf16.msra.mxu0 %v701
        %854 = vmatprep.subr.bf16.mxu0 %v707
        %855 = vmatpush1.bf16.msra.mxu0 %v706
        %856 = vmatprep.subr.bf16.mxu0 %v712
        %857 = vmatpush1.bf16.msra.mxu0 %v711
        %858 = vmatprep.subr.bf16.mxu0 %v717
        %859 = vmatpush1.bf16.msra.mxu0 %v716
        %860 = vmatprep.subr.bf16.mxu0 %v722
        %861 = vmatpush1.bf16.msra.mxu0 %v721
        %862 = vmatprep.subr.bf16.mxu0 %v727
        %863 = vmatpush1.bf16.msra.mxu0 %v726
        %864 = vmatprep.subr.bf16.mxu0 %v732
        %865 = vmatpush1.bf16.msra.mxu0 %v731
        %866 = vmatprep.subr.bf16.mxu0 %v737
        %867 = vmatpush1.bf16.msra.mxu0 %v736
        %868 = vmatprep.subr.bf16.mxu0 %v742
        %869 = vmatpush1.bf16.msra.mxu0 %v741
        %870 = vmatprep.subr.bf16.mxu0 %v747
        %871 = vmatpush1.bf16.msra.mxu0 %v746
        %872 = vmatprep.subr.bf16.mxu0 %v752
        %873 = vmatpush1.bf16.msra.mxu0 %v751
        %874 = vmatprep.subr.bf16.mxu0 %v757
        %875 = vmatpush1.bf16.msra.mxu0 %v756
        %876 = vmatprep.subr.bf16.mxu0 %v762
        %877 = vmatpush1.bf16.msra.mxu0 %v761
        %878 = vmatprep.mubr.bf16.mxu0 %v375
        %879 = vmatmul.mubr.bf16.gmra.mrb[0].mxu0 %v374
        %v880 = vpop.f32.mrb[0].mxu0
        %v881 = vadd.f32 0.0, %v880
        %v882 = vpop.f32.mrb[0].mxu0
        %v883 = vadd.f32 0.0, %v882
        %v884 = vpop.f32.mrb[0].mxu0
        %v885 = vadd.f32 0.0, %v884
        %v886 = vpop.f32.mrb[0].mxu0
        %v887 = vadd.f32 0.0, %v886
        %888 = vmatprep.mubr.bf16.mxu0 %v377
        %889 = vmatmul.mubr.bf16.gmra.mrb[0].mxu0 %v376
        %v890 = vpop.f32.mrb[0].mxu0
        %v891 = vadd.f32 0.0, %v890
        %v892 = vpop.f32.mrb[0].mxu0
        %v893 = vadd.f32 0.0, %v892
        %v894 = vpop.f32.mrb[0].mxu0
        %v895 = vadd.f32 0.0, %v894
        %v896 = vpop.f32.mrb[0].mxu0
        %v897 = vadd.f32 0.0, %v896
        %898 = vmatprep.mubr.bf16.mxu0 %v379
        %899 = vmatmul.mubr.bf16.gmra.mrb[0].mxu0 %v378
        %v900 = vpop.f32.mrb[0].mxu0
        %v901 = vadd.f32 0.0, %v900
        %v902 = vpop.f32.mrb[0].mxu0
        %v903 = vadd.f32 0.0, %v902
        %v904 = vpop.f32.mrb[0].mxu0
        %v905 = vadd.f32 0.0, %v904
        %v906 = vpop.f32.mrb[0].mxu0
        %v907 = vadd.f32 0.0, %v906
        %908 = vmatprep.mubr.bf16.mxu0 %v381
        %909 = vmatmul.mubr.bf16.gmra.mrb[0].mxu0 %v380
        %v910 = vpop.f32.mrb[0].mxu0
        %v911 = vadd.f32 0.0, %v910
        %v912 = vpop.f32.mrb[0].mxu0
        %v913 = vadd.f32 0.0, %v912
        %v914 = vpop.f32.mrb[0].mxu0
        %v915 = vadd.f32 0.0, %v914
        %v916 = vpop.f32.mrb[0].mxu0
        %v917 = vadd.f32 0.0, %v916
        %918 = vmatprep.mubr.bf16.mxu0 %v383
        %919 = vmatmul.mubr.bf16.gmra.mrb[0].mxu0 %v382
        %v920 = vpop.f32.mrb[0].mxu0
        %v921 = vadd.f32 0.0, %v920
        %v922 = vpop.f32.mrb[0].mxu0
        %v923 = vadd.f32 0.0, %v922
        %v924 = vpop.f32.mrb[0].mxu0
        %v925 = vadd.f32 0.0, %v924
        %v926 = vpop.f32.mrb[0].mxu0
        %v927 = vadd.f32 0.0, %v926
        %928 = vmatprep.mubr.bf16.mxu0 %v385
        %929 = vmatmul.mubr.bf16.gmra.mrb[0].mxu0 %v384
        %v930 = vpop.f32.mrb[0].mxu0
        %v931 = vadd.f32 0.0, %v930
        %v932 = vpop.f32.mrb[0].mxu0
        %v933 = vadd.f32 0.0, %v932
        %v934 = vpop.f32.mrb[0].mxu0
        %v935 = vadd.f32 0.0, %v934
        %v936 = vpop.f32.mrb[0].mxu0
        %v937 = vadd.f32 0.0, %v936
        %938 = vmatprep.mubr.bf16.mxu0 %v387
        %939 = vmatmul.mubr.bf16.gmra.mrb[0].mxu0 %v386
        %v940 = vpop.f32.mrb[0].mxu0
        %v941 = vadd.f32 0.0, %v940
        %v942 = vpop.f32.mrb[0].mxu0
        %v943 = vadd.f32 0.0, %v942
        %v944 = vpop.f32.mrb[0].mxu0
        %v945 = vadd.f32 0.0, %v944
        %v946 = vpop.f32.mrb[0].mxu0
        %v947 = vadd.f32 0.0, %v946
        %948 = vmatprep.mubr.bf16.mxu0 %v389
        %949 = vmatmul.mubr.bf16.gmra.mrb[0].mxu0 %v388
        %v950 = vpop.f32.mrb[0].mxu0
        %v951 = vadd.f32 0.0, %v950
        %v952 = vpop.f32.mrb[0].mxu0
        %v953 = vadd.f32 0.0, %v952
        %v954 = vpop.f32.mrb[0].mxu0
        %v955 = vadd.f32 0.0, %v954
        %v956 = vpop.f32.mrb[0].mxu0
        %v957 = vadd.f32 0.0, %v956
        %958 = vmatprep.mubr.bf16.mxu0 %v391
        %959 = vmatmul.mubr.bf16.gmra.mrb[0].mxu0 %v390
        %v960 = vpop.f32.mrb[0].mxu0
        %v961 = vadd.f32 0.0, %v960
        %v962 = vpop.f32.mrb[0].mxu0
        %v963 = vadd.f32 0.0, %v962
        %v964 = vpop.f32.mrb[0].mxu0
        %v965 = vadd.f32 0.0, %v964
        %v966 = vpop.f32.mrb[0].mxu0
        %v967 = vadd.f32 0.0, %v966
        %968 = vmatprep.mubr.bf16.mxu0 %v393
        %969 = vmatmul.mubr.bf16.gmra.mrb[0].mxu0 %v392
        %v970 = vpop.f32.mrb[0].mxu0
        %v971 = vadd.f32 0.0, %v970
        %v972 = vpop.f32.mrb[0].mxu0
        %v973 = vadd.f32 0.0, %v972
        %v974 = vpop.f32.mrb[0].mxu0
        %v975 = vadd.f32 0.0, %v974
        %v976 = vpop.f32.mrb[0].mxu0
        %v977 = vadd.f32 0.0, %v976
        %978 = vmatprep.mubr.bf16.mxu0 %v395
        %979 = vmatmul.mubr.bf16.gmra.mrb[0].mxu0 %v394
        %v980 = vpop.f32.mrb[0].mxu0
        %v981 = vadd.f32 0.0, %v980
        %v982 = vpop.f32.mrb[0].mxu0
        %v983 = vadd.f32 0.0, %v982
        %v984 = vpop.f32.mrb[0].mxu0
        %v985 = vadd.f32 0.0, %v984
        %v986 = vpop.f32.mrb[0].mxu0
        %v987 = vadd.f32 0.0, %v986
        %988 = vmatprep.mubr.bf16.mxu0 %v397
        %989 = vmatmul.mubr.bf16.gmra.mrb[0].mxu0 %v396
        %v990 = vpop.f32.mrb[0].mxu0
        %v991 = vadd.f32 0.0, %v990
        %v992 = vpop.f32.mrb[0].mxu0
        %v993 = vadd.f32 0.0, %v992
        %v994 = vpop.f32.mrb[0].mxu0
        %v995 = vadd.f32 0.0, %v994
        %v996 = vpop.f32.mrb[0].mxu0
        %v997 = vadd.f32 0.0, %v996
        %998 = vmatprep.mubr.bf16.mxu0 %v399
        %999 = vmatmul.mubr.bf16.gmra.mrb[0].mxu0 %v398
        %v1000 = vpop.f32.mrb[0].mxu0
        %v1001 = vadd.f32 0.0, %v1000
        %v1002 = vpop.f32.mrb[0].mxu0
        %v1003 = vadd.f32 0.0, %v1002
        %v1004 = vpop.f32.mrb[0].mxu0
        %v1005 = vadd.f32 0.0, %v1004
        %v1006 = vpop.f32.mrb[0].mxu0
        %v1007 = vadd.f32 0.0, %v1006
        %1008 = vmatprep.mubr.bf16.mxu0 %v401
        %1009 = vmatmul.mubr.bf16.gmra.mrb[0].mxu0 %v400
        %v1010 = vpop.f32.mrb[0].mxu0
        %v1011 = vadd.f32 0.0, %v1010
        %v1012 = vpop.f32.mrb[0].mxu0
        %v1013 = vadd.f32 0.0, %v1012
        %v1014 = vpop.f32.mrb[0].mxu0
        %v1015 = vpop.f32.mrb[0].mxu0
        %1016 = vdwg.mxu0
        %1017 = vmatprep.subr.bf16.mxu0 %v689
        %1018 = vmatpush1.bf16.msra.mxu0 %v688
        %1019 = vmatprep.subr.bf16.mxu0 %v694
        %1020 = vmatpush1.bf16.msra.mxu0 %v693
        %1021 = vmatprep.subr.bf16.mxu0 %v699
        %1022 = vmatpush1.bf16.msra.mxu0 %v698
        %1023 = vmatprep.subr.bf16.mxu0 %v704
        %1024 = vmatpush1.bf16.msra.mxu0 %v703
        %1025 = vmatprep.subr.bf16.mxu0 %v709
        %1026 = vmatpush1.bf16.msra.mxu0 %v708
        %1027 = vmatprep.subr.bf16.mxu0 %v714
        %1028 = vmatpush1.bf16.msra.mxu0 %v713
        %1029 = vmatprep.subr.bf16.mxu0 %v719
        %1030 = vmatpush1.bf16.msra.mxu0 %v718
        %1031 = vmatprep.subr.bf16.mxu0 %v724
        %1032 = vmatpush1.bf16.msra.mxu0 %v723
        %1033 = vmatprep.subr.bf16.mxu0 %v729
        %1034 = vmatpush1.bf16.msra.mxu0 %v728
        %1035 = vmatprep.subr.bf16.mxu0 %v734
        %1036 = vmatpush1.bf16.msra.mxu0 %v733
        %1037 = vmatprep.subr.bf16.mxu0 %v739
        %1038 = vmatpush1.bf16.msra.mxu0 %v738
        %1039 = vmatprep.subr.bf16.mxu0 %v744
        %1040 = vmatpush1.bf16.msra.mxu0 %v743
        %1041 = vmatprep.subr.bf16.mxu0 %v749
        %1042 = vmatpush1.bf16.msra.mxu0 %v748
        %1043 = vmatprep.subr.bf16.mxu0 %v754
        %1044 = vmatpush1.bf16.msra.mxu0 %v753
        %1045 = vmatprep.subr.bf16.mxu0 %v759
        %1046 = vmatpush1.bf16.msra.mxu0 %v758
        %1047 = vmatprep.subr.bf16.mxu0 %v764
        %1048 = vmatpush1.bf16.msra.mxu0 %v763
        %1049 = vmatprep.mubr.bf16.mxu0 %v375
        %1050 = vmatmul.mubr.bf16.gmra.mrb[0].mxu0 %v374
        %v1051 = vpop.f32.mrb[0].mxu0
        %v1052 = vadd.f32 0.0, %v1051
        %v1053 = vpop.f32.mrb[0].mxu0
        %v1054 = vadd.f32 0.0, %v1053
        %v1055 = vpop.f32.mrb[0].mxu0
        %v1056 = vadd.f32 0.0, %v1055
        %v1057 = vpop.f32.mrb[0].mxu0
        %v1058 = vadd.f32 0.0, %v1057
        %1059 = vmatprep.mubr.bf16.mxu0 %v377
        %1060 = vmatmul.mubr.bf16.gmra.mrb[0].mxu0 %v376
        %v1061 = vpop.f32.mrb[0].mxu0
        %v1062 = vadd.f32 0.0, %v1061
        %v1063 = vpop.f32.mrb[0].mxu0
        %v1064 = vadd.f32 0.0, %v1063
        %v1065 = vpop.f32.mrb[0].mxu0
        %v1066 = vadd.f32 0.0, %v1065
        %v1067 = vpop.f32.mrb[0].mxu0
        %v1068 = vadd.f32 0.0, %v1067
        %1069 = vmatprep.mubr.bf16.mxu0 %v379
        %1070 = vmatmul.mubr.bf16.gmra.mrb[0].mxu0 %v378
        %v1071 = vpop.f32.mrb[0].mxu0
        %v1072 = vadd.f32 0.0, %v1071
        %v1073 = vpop.f32.mrb[0].mxu0
        %v1074 = vadd.f32 0.0, %v1073
        %v1075 = vpop.f32.mrb[0].mxu0
        %v1076 = vadd.f32 0.0, %v1075
        %v1077 = vpop.f32.mrb[0].mxu0
        %v1078 = vadd.f32 0.0, %v1077
        %1079 = vmatprep.mubr.bf16.mxu0 %v381
        %1080 = vmatmul.mubr.bf16.gmra.mrb[0].mxu0 %v380
        %v1081 = vpop.f32.mrb[0].mxu0
        %v1082 = vadd.f32 0.0, %v1081
        %v1083 = vpop.f32.mrb[0].mxu0
        %v1084 = vadd.f32 0.0, %v1083
        %v1085 = vpop.f32.mrb[0].mxu0
        %v1086 = vadd.f32 0.0, %v1085
        %v1087 = vpop.f32.mrb[0].mxu0
        %v1088 = vadd.f32 0.0, %v1087
        %1089 = vmatprep.mubr.bf16.mxu0 %v383
        %1090 = vmatmul.mubr.bf16.gmra.mrb[0].mxu0 %v382
        %v1091 = vpop.f32.mrb[0].mxu0
        %v1092 = vadd.f32 0.0, %v1091
        %v1093 = vpop.f32.mrb[0].mxu0
        %v1094 = vadd.f32 0.0, %v1093
        %v1095 = vpop.f32.mrb[0].mxu0
        %v1096 = vadd.f32 0.0, %v1095
        %v1097 = vpop.f32.mrb[0].mxu0
        %v1098 = vadd.f32 0.0, %v1097
        %1099 = vmatprep.mubr.bf16.mxu0 %v385
        %1100 = vmatmul.mubr.bf16.gmra.mrb[0].mxu0 %v384
        %v1101 = vpop.f32.mrb[0].mxu0
        %v1102 = vadd.f32 0.0, %v1101
        %v1103 = vpop.f32.mrb[0].mxu0
        %v1104 = vadd.f32 0.0, %v1103
        %v1105 = vpop.f32.mrb[0].mxu0
        %v1106 = vadd.f32 0.0, %v1105
        %v1107 = vpop.f32.mrb[0].mxu0
        %v1108 = vadd.f32 0.0, %v1107
        %1109 = vmatprep.mubr.bf16.mxu0 %v387
        %1110 = vmatmul.mubr.bf16.gmra.mrb[0].mxu0 %v386
        %v1111 = vpop.f32.mrb[0].mxu0
        %v1112 = vadd.f32 0.0, %v1111
        %v1113 = vpop.f32.mrb[0].mxu0
        %v1114 = vadd.f32 0.0, %v1113
        %v1115 = vpop.f32.mrb[0].mxu0
        %v1116 = vadd.f32 0.0, %v1115
        %v1117 = vpop.f32.mrb[0].mxu0
        %v1118 = vadd.f32 0.0, %v1117
        %1119 = vmatprep.mubr.bf16.mxu0 %v389
        %1120 = vmatmul.mubr.bf16.gmra.mrb[0].mxu0 %v388
        %v1121 = vpop.f32.mrb[0].mxu0
        %v1122 = vadd.f32 0.0, %v1121
        %v1123 = vpop.f32.mrb[0].mxu0
        %v1124 = vadd.f32 0.0, %v1123
        %v1125 = vpop.f32.mrb[0].mxu0
        %v1126 = vadd.f32 0.0, %v1125
        %v1127 = vpop.f32.mrb[0].mxu0
        %v1128 = vadd.f32 0.0, %v1127
        %1129 = vmatprep.mubr.bf16.mxu0 %v391
        %1130 = vmatmul.mubr.bf16.gmra.mrb[0].mxu0 %v390
        %v1131 = vpop.f32.mrb[0].mxu0
        %v1132 = vadd.f32 0.0, %v1131
        %v1133 = vpop.f32.mrb[0].mxu0
        %v1134 = vadd.f32 0.0, %v1133
        %v1135 = vpop.f32.mrb[0].mxu0
        %v1136 = vadd.f32 0.0, %v1135
        %v1137 = vpop.f32.mrb[0].mxu0
        %v1138 = vadd.f32 0.0, %v1137
        %1139 = vmatprep.mubr.bf16.mxu0 %v393
        %1140 = vmatmul.mubr.bf16.gmra.mrb[0].mxu0 %v392
        %v1141 = vpop.f32.mrb[0].mxu0
        %v1142 = vadd.f32 0.0, %v1141
        %v1143 = vpop.f32.mrb[0].mxu0
        %v1144 = vadd.f32 0.0, %v1143
        %v1145 = vpop.f32.mrb[0].mxu0
        %v1146 = vadd.f32 0.0, %v1145
        %v1147 = vpop.f32.mrb[0].mxu0
        %v1148 = vadd.f32 0.0, %v1147
        %1149 = vmatprep.mubr.bf16.mxu0 %v395
        %1150 = vmatmul.mubr.bf16.gmra.mrb[0].mxu0 %v394
        %v1151 = vpop.f32.mrb[0].mxu0
        %v1152 = vadd.f32 0.0, %v1151
        %v1153 = vpop.f32.mrb[0].mxu0
        %v1154 = vadd.f32 0.0, %v1153
        %v1155 = vpop.f32.mrb[0].mxu0
        %v1156 = vadd.f32 0.0, %v1155
        %v1157 = vpop.f32.mrb[0].mxu0
        %v1158 = vadd.f32 0.0, %v1157
        %1159 = vmatprep.mubr.bf16.mxu0 %v397
        %1160 = vmatmul.mubr.bf16.gmra.mrb[0].mxu0 %v396
        %v1161 = vpop.f32.mrb[0].mxu0
        %v1162 = vadd.f32 0.0, %v1161
        %v1163 = vpop.f32.mrb[0].mxu0
        %v1164 = vadd.f32 0.0, %v1163
        %v1165 = vpop.f32.mrb[0].mxu0
        %v1166 = vadd.f32 0.0, %v1165
        %v1167 = vpop.f32.mrb[0].mxu0
        %v1168 = vadd.f32 0.0, %v1167
        %1169 = vmatprep.mubr.bf16.mxu0 %v399
        %1170 = vmatmul.mubr.bf16.gmra.mrb[0].mxu0 %v398
        %v1171 = vpop.f32.mrb[0].mxu0
        %v1172 = vadd.f32 0.0, %v1171
        %v1173 = vpop.f32.mrb[0].mxu0
        %v1174 = vadd.f32 0.0, %v1173
        %v1175 = vpop.f32.mrb[0].mxu0
        %v1176 = vadd.f32 0.0, %v1175
        %v1177 = vpop.f32.mrb[0].mxu0
        %v1178 = vadd.f32 0.0, %v1177
        %1179 = vmatprep.mubr.bf16.mxu0 %v401
        %1180 = vmatmul.mubr.bf16.gmra.mrb[0].mxu0 %v400
        %v1181 = vpop.f32.mrb[0].mxu0
        %v1182 = vadd.f32 0.0, %v1181
        %v1183 = vpop.f32.mrb[0].mxu0
        %v1184 = vadd.f32 0.0, %v1183
        %v1185 = vpop.f32.mrb[0].mxu0
        %v1186 = vpop.f32.mrb[0].mxu0
        %1187 = vdwg.mxu0
        %1188 = vmatprep.subr.bf16.mxu0 0
        %1189 = vmatpush1.bf16.msra.mxu0 %v690
        %1190 = vmatprep.subr.bf16.mxu0 0
        %1191 = vmatpush1.bf16.msra.mxu0 %v695
        %1192 = vmatprep.subr.bf16.mxu0 0
        %1193 = vmatpush1.bf16.msra.mxu0 %v700
        %1194 = vmatprep.subr.bf16.mxu0 0
        %1195 = vmatpush1.bf16.msra.mxu0 %v705
        %1196 = vmatprep.subr.bf16.mxu0 0
        %1197 = vmatpush1.bf16.msra.mxu0 %v710
        %1198 = vmatprep.subr.bf16.mxu0 0
        %1199 = vmatpush1.bf16.msra.mxu0 %v715
        %1200 = vmatprep.subr.bf16.mxu0 0
        %1201 = vmatpush1.bf16.msra.mxu0 %v720
        %1202 = vmatprep.subr.bf16.mxu0 0
        %1203 = vmatpush1.bf16.msra.mxu0 %v725
        %1204 = vmatprep.subr.bf16.mxu0 0
        %1205 = vmatpush1.bf16.msra.mxu0 %v730
        %1206 = vmatprep.subr.bf16.mxu0 0
        %1207 = vmatpush1.bf16.msra.mxu0 %v735
        %1208 = vmatprep.subr.bf16.mxu0 0
        %1209 = vmatpush1.bf16.msra.mxu0 %v740
        %1210 = vmatprep.subr.bf16.mxu0 0
        %1211 = vmatpush1.bf16.msra.mxu0 %v745
        %1212 = vmatprep.subr.bf16.mxu0 0
        %1213 = vmatpush1.bf16.msra.mxu0 %v750
        %1214 = vmatprep.subr.bf16.mxu0 0
        %1215 = vmatpush1.bf16.msra.mxu0 %v755
        %1216 = vmatprep.subr.bf16.mxu0 0
        %1217 = vmatpush1.bf16.msra.mxu0 %v760
        %1218 = vmatprep.subr.bf16.mxu0 0
        %1219 = vmatpush1.bf16.msra.mxu0 %v765
        %1220 = vmatprep.mubr.bf16.mxu0 %v375
        %1221 = vmatmul.mubr.bf16.gmra.mrb[0].mxu0 %v374
        %v1222 = vpop.f32.mrb[0].mxu0
        %v1223 = vadd.f32 0.0, %v1222
        %v1224 = vpop.f32.mrb[0].mxu0
        %v1225 = vpop.f32.mrb[0].mxu0
        %v1226 = vadd.f32 0.0, %v1225
        %v1227 = vpop.f32.mrb[0].mxu0
        %1228 = vmatprep.mubr.bf16.mxu0 %v377
        %1229 = vmatmul.mubr.bf16.gmra.mrb[0].mxu0 %v376
        %v1230 = vpop.f32.mrb[0].mxu0
        %v1231 = vadd.f32 0.0, %v1230
        %v1232 = vpop.f32.mrb[0].mxu0
        %v1233 = vpop.f32.mrb[0].mxu0
        %v1234 = vadd.f32 0.0, %v1233
        %v1235 = vpop.f32.mrb[0].mxu0
        %1236 = vmatprep.mubr.bf16.mxu0 %v379
        %1237 = vmatmul.mubr.bf16.gmra.mrb[0].mxu0 %v378
        %v1238 = vpop.f32.mrb[0].mxu0
        %v1239 = vadd.f32 0.0, %v1238
        %v1240 = vpop.f32.mrb[0].mxu0
        %v1241 = vpop.f32.mrb[0].mxu0
        %v1242 = vadd.f32 0.0, %v1241
        %v1243 = vpop.f32.mrb[0].mxu0
        %1244 = vmatprep.mubr.bf16.mxu0 %v381
        %1245 = vmatmul.mubr.bf16.gmra.mrb[0].mxu0 %v380
        %v1246 = vpop.f32.mrb[0].mxu0
        %v1247 = vadd.f32 0.0, %v1246
        %v1248 = vpop.f32.mrb[0].mxu0
        %v1249 = vpop.f32.mrb[0].mxu0
        %v1250 = vadd.f32 0.0, %v1249
        %v1251 = vpop.f32.mrb[0].mxu0
        %1252 = vmatprep.mubr.bf16.mxu0 %v383
        %1253 = vmatmul.mubr.bf16.gmra.mrb[0].mxu0 %v382
        %v1254 = vpop.f32.mrb[0].mxu0
        %v1255 = vadd.f32 0.0, %v1254
        %v1256 = vpop.f32.mrb[0].mxu0
        %v1257 = vpop.f32.mrb[0].mxu0
        %v1258 = vadd.f32 0.0, %v1257
        %v1259 = vpop.f32.mrb[0].mxu0
        %1260 = vmatprep.mubr.bf16.mxu0 %v385
        %1261 = vmatmul.mubr.bf16.gmra.mrb[0].mxu0 %v384
        %v1262 = vpop.f32.mrb[0].mxu0
        %v1263 = vadd.f32 0.0, %v1262
        %v1264 = vpop.f32.mrb[0].mxu0
        %v1265 = vpop.f32.mrb[0].mxu0
        %v1266 = vadd.f32 0.0, %v1265
        %v1267 = vpop.f32.mrb[0].mxu0
        %1268 = vmatprep.mubr.bf16.mxu0 %v387
        %1269 = vmatmul.mubr.bf16.gmra.mrb[0].mxu0 %v386
        %v1270 = vpop.f32.mrb[0].mxu0
        %v1271 = vadd.f32 0.0, %v1270
        %v1272 = vpop.f32.mrb[0].mxu0
        %v1273 = vpop.f32.mrb[0].mxu0
        %v1274 = vadd.f32 0.0, %v1273
        %v1275 = vpop.f32.mrb[0].mxu0
        %1276 = vmatprep.mubr.bf16.mxu0 %v389
        %1277 = vmatmul.mubr.bf16.gmra.mrb[0].mxu0 %v388
        %v1278 = vpop.f32.mrb[0].mxu0
        %v1279 = vadd.f32 0.0, %v1278
        %v1280 = vpop.f32.mrb[0].mxu0
        %v1281 = vpop.f32.mrb[0].mxu0
        %v1282 = vadd.f32 0.0, %v1281
        %v1283 = vpop.f32.mrb[0].mxu0
        %1284 = vmatprep.mubr.bf16.mxu0 %v391
        %1285 = vmatmul.mubr.bf16.gmra.mrb[0].mxu0 %v390
        %v1286 = vpop.f32.mrb[0].mxu0
        %v1287 = vadd.f32 0.0, %v1286
        %v1288 = vpop.f32.mrb[0].mxu0
        %v1289 = vpop.f32.mrb[0].mxu0
        %v1290 = vadd.f32 0.0, %v1289
        %v1291 = vpop.f32.mrb[0].mxu0
        %1292 = vmatprep.mubr.bf16.mxu0 %v393
        %1293 = vmatmul.mubr.bf16.gmra.mrb[0].mxu0 %v392
        %v1294 = vpop.f32.mrb[0].mxu0
        %v1295 = vadd.f32 0.0, %v1294
        %v1296 = vpop.f32.mrb[0].mxu0
        %v1297 = vpop.f32.mrb[0].mxu0
        %v1298 = vadd.f32 0.0, %v1297
        %v1299 = vpop.f32.mrb[0].mxu0
        %1300 = vmatprep.mubr.bf16.mxu0 %v395
        %1301 = vmatmul.mubr.bf16.gmra.mrb[0].mxu0 %v394
        %v1302 = vpop.f32.mrb[0].mxu0
        %v1303 = vadd.f32 0.0, %v1302
        %v1304 = vpop.f32.mrb[0].mxu0
        %v1305 = vpop.f32.mrb[0].mxu0
        %v1306 = vadd.f32 0.0, %v1305
        %v1307 = vpop.f32.mrb[0].mxu0
        %1308 = vmatprep.mubr.bf16.mxu0 %v397
        %1309 = vmatmul.mubr.bf16.gmra.mrb[0].mxu0 %v396
        %v1310 = vpop.f32.mrb[0].mxu0
        %v1311 = vadd.f32 0.0, %v1310
        %v1312 = vpop.f32.mrb[0].mxu0
        %v1313 = vpop.f32.mrb[0].mxu0
        %v1314 = vadd.f32 0.0, %v1313
        %v1315 = vpop.f32.mrb[0].mxu0
        %1316 = vmatprep.mubr.bf16.mxu0 %v399
        %1317 = vmatmul.mubr.bf16.gmra.mrb[0].mxu0 %v398
        %v1318 = vpop.f32.mrb[0].mxu0
        %v1319 = vadd.f32 0.0, %v1318
        %v1320 = vpop.f32.mrb[0].mxu0
        %v1321 = vpop.f32.mrb[0].mxu0
        %v1322 = vadd.f32 0.0, %v1321
        %v1323 = vpop.f32.mrb[0].mxu0
        %1324 = vmatprep.mubr.bf16.mxu0 %v401
        %1325 = vmatmul.mubr.bf16.gmra.mrb[0].mxu0 %v400
        %v1326 = vpop.f32.mrb[0].mxu0
        %v1327 = vadd.f32 0.0, %v1326
        %v1328 = vpop.f32.mrb[0].mxu0
        %v1329 = vpop.f32.mrb[0].mxu0
        %v1330 = vpop.f32.mrb[0].mxu0
        %1331 = vdwg.mxu0
        %1332 = vst [vmem:[#allocation2] sm:$0xff] %v881
        %1333 = vst [vmem:[#allocation2 + $0x8] sm:$0xff] %v883
        %1334 = vst [vmem:[#allocation2 + $0x10] sm:$0xff] %v1052
        %1335 = vst [vmem:[#allocation2 + $0x18] sm:$0xff] %v1054
        %vm1336 = vcmask 588800
        %1337 = vst.msk [vmem:[#allocation2 + $0x20] sm:$0xff] %vm1336, %v1223
        %1338 = vst [vmem:[#allocation2 + $0x28] sm:$0xff] %v885
        %1339 = vst [vmem:[#allocation2 + $0x30] sm:$0xff] %v887
        %1340 = vst [vmem:[#allocation2 + $0x38] sm:$0xff] %v1056
        %1341 = vst [vmem:[#allocation2 + $0x40] sm:$0xff] %v1058
        %1342 = vst.msk [vmem:[#allocation2 + $0x48] sm:$0xff] %vm1336, %v1226
        %1343 = vst [vmem:[#allocation2 + $0x50] sm:$0xff] %v891
        %1344 = vst [vmem:[#allocation2 + $0x58] sm:$0xff] %v893
        %1345 = vst [vmem:[#allocation2 + $0x60] sm:$0xff] %v1062
        %1346 = vst [vmem:[#allocation2 + $0x68] sm:$0xff] %v1064
        %1347 = vst.msk [vmem:[#allocation2 + $0x70] sm:$0xff] %vm1336, %v1231
        %1348 = vst [vmem:[#allocation2 + $0x78] sm:$0xff] %v895
        %1349 = vst [vmem:[#allocation2 + $0x80] sm:$0xff] %v897
        %1350 = vst [vmem:[#allocation2 + $0x88] sm:$0xff] %v1066
        %1351 = vst [vmem:[#allocation2 + $0x90] sm:$0xff] %v1068
        %1352 = vst.msk [vmem:[#allocation2 + $0x98] sm:$0xff] %vm1336, %v1234
        %1353 = vst [vmem:[#allocation2 + $0xa0] sm:$0xff] %v901
        %1354 = vst [vmem:[#allocation2 + $0xa8] sm:$0xff] %v903
        %1355 = vst [vmem:[#allocation2 + $0xb0] sm:$0xff] %v1072
        %1356 = vst [vmem:[#allocation2 + $0xb8] sm:$0xff] %v1074
        %1357 = vst.msk [vmem:[#allocation2 + $0xc0] sm:$0xff] %vm1336, %v1239
        %1358 = vst [vmem:[#allocation2 + $0xc8] sm:$0xff] %v905
        %1359 = vst [vmem:[#allocation2 + $0xd0] sm:$0xff] %v907
        %1360 = vst [vmem:[#allocation2 + $0xd8] sm:$0xff] %v1076
        %1361 = vst [vmem:[#allocation2 + $0xe0] sm:$0xff] %v1078
        %1362 = vst.msk [vmem:[#allocation2 + $0xe8] sm:$0xff] %vm1336, %v1242
        %1363 = vst [vmem:[#allocation2 + $0xf0] sm:$0xff] %v911
        %1364 = vst [vmem:[#allocation2 + $0xf8] sm:$0xff] %v913
        %1365 = vst [vmem:[#allocation2 + $0x100] sm:$0xff] %v1082
        %1366 = vst [vmem:[#allocation2 + $0x108] sm:$0xff] %v1084
        %1367 = vst.msk [vmem:[#allocation2 + $0x110] sm:$0xff] %vm1336, %v1247
        %1368 = vst [vmem:[#allocation2 + $0x118] sm:$0xff] %v915
        %1369 = vst [vmem:[#allocation2 + $0x120] sm:$0xff] %v917
        %1370 = vst [vmem:[#allocation2 + $0x128] sm:$0xff] %v1086
        %1371 = vst [vmem:[#allocation2 + $0x130] sm:$0xff] %v1088
        %1372 = vst.msk [vmem:[#allocation2 + $0x138] sm:$0xff] %vm1336, %v1250
        %1373 = vst [vmem:[#allocation2 + $0x140] sm:$0xff] %v921
        %1374 = vst [vmem:[#allocation2 + $0x148] sm:$0xff] %v923
        %1375 = vst [vmem:[#allocation2 + $0x150] sm:$0xff] %v1092
        %1376 = vst [vmem:[#allocation2 + $0x158] sm:$0xff] %v1094
        %1377 = vst.msk [vmem:[#allocation2 + $0x160] sm:$0xff] %vm1336, %v1255
        %1378 = vst [vmem:[#allocation2 + $0x168] sm:$0xff] %v925
        %1379 = vst [vmem:[#allocation2 + $0x170] sm:$0xff] %v927
        %1380 = vst [vmem:[#allocation2 + $0x178] sm:$0xff] %v1096
        %1381 = vst [vmem:[#allocation2 + $0x180] sm:$0xff] %v1098
        %1382 = vst.msk [vmem:[#allocation2 + $0x188] sm:$0xff] %vm1336, %v1258
        %1383 = vst [vmem:[#allocation2 + $0x190] sm:$0xff] %v931
        %1384 = vst [vmem:[#allocation2 + $0x198] sm:$0xff] %v933
        %1385 = vst [vmem:[#allocation2 + $0x1a0] sm:$0xff] %v1102
        %1386 = vst [vmem:[#allocation2 + $0x1a8] sm:$0xff] %v1104
        %1387 = vst.msk [vmem:[#allocation2 + $0x1b0] sm:$0xff] %vm1336, %v1263
        %1388 = vst [vmem:[#allocation2 + $0x1b8] sm:$0xff] %v935
        %1389 = vst [vmem:[#allocation2 + $0x1c0] sm:$0xff] %v937
        %1390 = vst [vmem:[#allocation2 + $0x1c8] sm:$0xff] %v1106
        %1391 = vst [vmem:[#allocation2 + $0x1d0] sm:$0xff] %v1108
        %1392 = vst.msk [vmem:[#allocation2 + $0x1d8] sm:$0xff] %vm1336, %v1266
        %1393 = vst [vmem:[#allocation2 + $0x1e0] sm:$0xff] %v941
        %1394 = vst [vmem:[#allocation2 + $0x1e8] sm:$0xff] %v943
        %1395 = vst [vmem:[#allocation2 + $0x1f0] sm:$0xff] %v1112
        %1396 = vst [vmem:[#allocation2 + $0x1f8] sm:$0xff] %v1114
        %1397 = vst.msk [vmem:[#allocation2 + $0x200] sm:$0xff] %vm1336, %v1271
        %1398 = vst [vmem:[#allocation2 + $0x208] sm:$0xff] %v945
        %1399 = vst [vmem:[#allocation2 + $0x210] sm:$0xff] %v947
        %1400 = vst [vmem:[#allocation2 + $0x218] sm:$0xff] %v1116
        %1401 = vst [vmem:[#allocation2 + $0x220] sm:$0xff] %v1118
        %1402 = vst.msk [vmem:[#allocation2 + $0x228] sm:$0xff] %vm1336, %v1274
        %1403 = vst [vmem:[#allocation2 + $0x230] sm:$0xff] %v951
        %1404 = vst [vmem:[#allocation2 + $0x238] sm:$0xff] %v953
        %1405 = vst [vmem:[#allocation2 + $0x240] sm:$0xff] %v1122
        %1406 = vst [vmem:[#allocation2 + $0x248] sm:$0xff] %v1124
        %1407 = vst.msk [vmem:[#allocation2 + $0x250] sm:$0xff] %vm1336, %v1279
        %1408 = vst [vmem:[#allocation2 + $0x258] sm:$0xff] %v955
        %1409 = vst [vmem:[#allocation2 + $0x260] sm:$0xff] %v957
        %1410 = vst [vmem:[#allocation2 + $0x268] sm:$0xff] %v1126
        %1411 = vst [vmem:[#allocation2 + $0x270] sm:$0xff] %v1128
        %1412 = vst.msk [vmem:[#allocation2 + $0x278] sm:$0xff] %vm1336, %v1282
        %1413 = vst [vmem:[#allocation2 + $0x280] sm:$0xff] %v961
        %1414 = vst [vmem:[#allocation2 + $0x288] sm:$0xff] %v963
        %1415 = vst [vmem:[#allocation2 + $0x290] sm:$0xff] %v1132
        %1416 = vst [vmem:[#allocation2 + $0x298] sm:$0xff] %v1134
        %1417 = vst.msk [vmem:[#allocation2 + $0x2a0] sm:$0xff] %vm1336, %v1287
        %1418 = vst [vmem:[#allocation2 + $0x2a8] sm:$0xff] %v965
        %1419 = vst [vmem:[#allocation2 + $0x2b0] sm:$0xff] %v967
        %1420 = vst [vmem:[#allocation2 + $0x2b8] sm:$0xff] %v1136
        %1421 = vst [vmem:[#allocation2 + $0x2c0] sm:$0xff] %v1138
        %1422 = vst.msk [vmem:[#allocation2 + $0x2c8] sm:$0xff] %vm1336, %v1290
        %1423 = vst [vmem:[#allocation2 + $0x2d0] sm:$0xff] %v971
        %1424 = vst [vmem:[#allocation2 + $0x2d8] sm:$0xff] %v973
        %1425 = vst [vmem:[#allocation2 + $0x2e0] sm:$0xff] %v1142
        %1426 = vst [vmem:[#allocation2 + $0x2e8] sm:$0xff] %v1144
        %1427 = vst.msk [vmem:[#allocation2 + $0x2f0] sm:$0xff] %vm1336, %v1295
        %1428 = vst [vmem:[#allocation2 + $0x2f8] sm:$0xff] %v975
        %1429 = vst [vmem:[#allocation2 + $0x300] sm:$0xff] %v977
        %1430 = vst [vmem:[#allocation2 + $0x308] sm:$0xff] %v1146
        %1431 = vst [vmem:[#allocation2 + $0x310] sm:$0xff] %v1148
        %1432 = vst.msk [vmem:[#allocation2 + $0x318] sm:$0xff] %vm1336, %v1298
        %1433 = vst [vmem:[#allocation2 + $0x320] sm:$0xff] %v981
        %1434 = vst [vmem:[#allocation2 + $0x328] sm:$0xff] %v983
        %1435 = vst [vmem:[#allocation2 + $0x330] sm:$0xff] %v1152
        %1436 = vst [vmem:[#allocation2 + $0x338] sm:$0xff] %v1154
        %1437 = vst.msk [vmem:[#allocation2 + $0x340] sm:$0xff] %vm1336, %v1303
        %1438 = vst [vmem:[#allocation2 + $0x348] sm:$0xff] %v985
        %1439 = vst [vmem:[#allocation2 + $0x350] sm:$0xff] %v987
        %1440 = vst [vmem:[#allocation2 + $0x358] sm:$0xff] %v1156
        %1441 = vst [vmem:[#allocation2 + $0x360] sm:$0xff] %v1158
        %1442 = vst.msk [vmem:[#allocation2 + $0x368] sm:$0xff] %vm1336, %v1306
        %1443 = vst [vmem:[#allocation2 + $0x370] sm:$0xff] %v991
        %1444 = vst [vmem:[#allocation2 + $0x378] sm:$0xff] %v993
        %1445 = vst [vmem:[#allocation2 + $0x380] sm:$0xff] %v1162
        %1446 = vst [vmem:[#allocation2 + $0x388] sm:$0xff] %v1164
        %1447 = vst.msk [vmem:[#allocation2 + $0x390] sm:$0xff] %vm1336, %v1311
        %1448 = vst [vmem:[#allocation2 + $0x398] sm:$0xff] %v995
        %1449 = vst [vmem:[#allocation2 + $0x3a0] sm:$0xff] %v997
        %1450 = vst [vmem:[#allocation2 + $0x3a8] sm:$0xff] %v1166
        %1451 = vst [vmem:[#allocation2 + $0x3b0] sm:$0xff] %v1168
        %1452 = vst.msk [vmem:[#allocation2 + $0x3b8] sm:$0xff] %vm1336, %v1314
        %1453 = vst [vmem:[#allocation2 + $0x3c0] sm:$0xff] %v1001
        %1454 = vst [vmem:[#allocation2 + $0x3c8] sm:$0xff] %v1003
        %1455 = vst [vmem:[#allocation2 + $0x3d0] sm:$0xff] %v1172
        %1456 = vst [vmem:[#allocation2 + $0x3d8] sm:$0xff] %v1174
        %1457 = vst.msk [vmem:[#allocation2 + $0x3e0] sm:$0xff] %vm1336, %v1319
        %1458 = vst [vmem:[#allocation2 + $0x3e8] sm:$0xff] %v1005
        %1459 = vst [vmem:[#allocation2 + $0x3f0] sm:$0xff] %v1007
        %1460 = vst [vmem:[#allocation2 + $0x3f8] sm:$0xff] %v1176
        %1461 = vst [vmem:[#allocation2 + $0x400] sm:$0xff] %v1178
        %1462 = vst.msk [vmem:[#allocation2 + $0x408] sm:$0xff] %vm1336, %v1322
        %1463 = vst [vmem:[#allocation2 + $0x410] sm:$0xff] %v1011
        %1464 = vst [vmem:[#allocation2 + $0x418] sm:$0xff] %v1013
        %1465 = vst [vmem:[#allocation2 + $0x420] sm:$0xff] %v1182
        %1466 = vst [vmem:[#allocation2 + $0x428] sm:$0xff] %v1184
        %1467 = vst.msk [vmem:[#allocation2 + $0x430] sm:$0xff] %vm1336, %v1327
        %v1468 = vld [vmem:[#allocation2] sm:$0xff]
        %v1469 = vld [vmem:[#allocation2 + $0x8] sm:$0xff]
        %v1470 = vld [vmem:[#allocation2 + $0x10] sm:$0xff]
        %v1471 = vld [vmem:[#allocation2 + $0x18] sm:$0xff]
        %v1472 = vld [vmem:[#allocation2 + $0x28] sm:$0xff]
        %v1473 = vld [vmem:[#allocation2 + $0x30] sm:$0xff]
        %v1474 = vld [vmem:[#allocation2 + $0x38] sm:$0xff]
        %v1475 = vld [vmem:[#allocation2 + $0x40] sm:$0xff]
        %1480 = vrot.lane.b32.xlu0 %v1472, 127
        %v1481 = vpop.permute.xlu0 %1480
        %1482 = vrot.lane.b32.xlu0 %v1473, 127
        %v1483 = vpop.permute.xlu0 %1482
        %1484 = vrot.lane.b32.xlu0 %v1474, 127
        %v1485 = vpop.permute.xlu0 %1484
        %1486 = vrot.lane.b32.xlu0 %v1475, 127
        %v1487 = vpop.permute.xlu0 %1486
        %vm1488 = vcmask 1039360
        %v1489 = vsel %vm1488, %v1481, %v1483
        %v1490 = vsel %vm1488, %v1483, %v1485
        %v1491 = vsel %vm1488, %v1485, %v1487
        %v1496 = vadd.f32 %v1468, %v1489
        %v1497 = vadd.f32 %v1469, %v1490
        %v1498 = vadd.f32 %v1470, %v1491
        %v1499 = vadd.f32 %v1471, %v1487
        %v1500 = vld [vmem:[#allocation2 + $0x50] sm:$0xff]
        %v1501 = vld [vmem:[#allocation2 + $0x58] sm:$0xff]
        %v1502 = vld [vmem:[#allocation2 + $0x60] sm:$0xff]
        %v1503 = vld [vmem:[#allocation2 + $0x68] sm:$0xff]
        %1508 = vrot.lane.b32.xlu0 %v1500, 126
        %v1509 = vpop.permute.xlu0 %1508
        %1510 = vrot.lane.b32.xlu0 %v1501, 126
        %v1511 = vpop.permute.xlu0 %1510
        %1512 = vrot.lane.b32.xlu0 %v1502, 126
        %v1513 = vpop.permute.xlu0 %1512
        %1514 = vrot.lane.b32.xlu0 %v1503, 126
        %v1515 = vpop.permute.xlu0 %1514
        %vm1516 = vcmask 1031168
        %v1517 = vsel %vm1516, %v1509, %v1511
        %v1518 = vsel %vm1516, %v1511, %v1513
        %v1519 = vsel %vm1516, %v1513, %v1515
        %v1524 = vadd.f32 %v1496, %v1517
        %v1525 = vadd.f32 %v1497, %v1518
        %v1526 = vadd.f32 %v1498, %v1519
        %v1527 = vadd.f32 %v1499, %v1515
        %v1528 = vld [vmem:[#allocation2 + $0x78] sm:$0xff]
        %v1529 = vld [vmem:[#allocation2 + $0x80] sm:$0xff]
        %v1530 = vld [vmem:[#allocation2 + $0x88] sm:$0xff]
        %v1531 = vld [vmem:[#allocation2 + $0x90] sm:$0xff]
        %1536 = vrot.lane.b32.xlu0 %v1528, 104
        %v1537 = vpop.permute.xlu0 %1536
        %1538 = vrot.lane.b32.xlu0 %v1529, 104
        %v1539 = vpop.permute.xlu0 %1538
        %1540 = vrot.lane.b32.xlu0 %v1530, 104
        %v1541 = vpop.permute.xlu0 %1540
        %1542 = vrot.lane.b32.xlu0 %v1531, 104
        %v1543 = vpop.permute.xlu0 %1542
        %vm1544 = vcmask 850944
        %v1545 = vsel %vm1544, %v1537, %v1539
        %v1546 = vsel %vm1544, %v1539, %v1541
        %v1547 = vsel %vm1544, %v1541, %v1543
        %v1552 = vadd.f32 %v1524, %v1545
        %v1553 = vadd.f32 %v1525, %v1546
        %v1554 = vadd.f32 %v1526, %v1547
        %v1555 = vadd.f32 %v1527, %v1543
        %v1556 = vld [vmem:[#allocation2 + $0xa0] sm:$0xff]
        %v1557 = vld [vmem:[#allocation2 + $0xa8] sm:$0xff]
        %v1558 = vld [vmem:[#allocation2 + $0xb0] sm:$0xff]
        %v1559 = vld [vmem:[#allocation2 + $0xb8] sm:$0xff]
        %1564 = vrot.lane.b32.xlu0 %v1556, 103
        %v1565 = vpop.permute.xlu0 %1564
        %1566 = vrot.lane.b32.xlu0 %v1557, 103
        %v1567 = vpop.permute.xlu0 %1566
        %1568 = vrot.lane.b32.xlu0 %v1558, 103
        %v1569 = vpop.permute.xlu0 %1568
        %1570 = vrot.lane.b32.xlu0 %v1559, 103
        %v1571 = vpop.permute.xlu0 %1570
        %vm1572 = vcmask 842752
        %v1573 = vsel %vm1572, %v1565, %v1567
        %v1574 = vsel %vm1572, %v1567, %v1569
        %v1575 = vsel %vm1572, %v1569, %v1571
        %v1580 = vadd.f32 %v1552, %v1573
        %v1581 = vadd.f32 %v1553, %v1574
        %v1582 = vadd.f32 %v1554, %v1575
        %v1583 = vadd.f32 %v1555, %v1571
        %v1584 = vld [vmem:[#allocation2 + $0xc8] sm:$0xff]
        %v1585 = vld [vmem:[#allocation2 + $0xd0] sm:$0xff]
        %v1586 = vld [vmem:[#allocation2 + $0xd8] sm:$0xff]
        %v1587 = vld [vmem:[#allocation2 + $0xe0] sm:$0xff]
        %1592 = vrot.lane.b32.xlu0 %v1584, 102
        %v1593 = vpop.permute.xlu0 %1592
        %1594 = vrot.lane.b32.xlu0 %v1585, 102
        %v1595 = vpop.permute.xlu0 %1594
        %1596 = vrot.lane.b32.xlu0 %v1586, 102
        %v1597 = vpop.permute.xlu0 %1596
        %1598 = vrot.lane.b32.xlu0 %v1587, 102
        %v1599 = vpop.permute.xlu0 %1598
        %vm1600 = vcmask 834560
        %v1601 = vsel %vm1600, %v1593, %v1595
        %v1602 = vsel %vm1600, %v1595, %v1597
        %v1603 = vsel %vm1600, %v1597, %v1599
        %v1608 = vadd.f32 %v1580, %v1601
        %v1609 = vadd.f32 %v1581, %v1602
        %v1610 = vadd.f32 %v1582, %v1603
        %v1611 = vadd.f32 %v1583, %v1599
        %v1612 = vld [vmem:[#allocation2 + $0xf0] sm:$0xff]
        %v1613 = vld [vmem:[#allocation2 + $0xf8] sm:$0xff]
        %v1614 = vld [vmem:[#allocation2 + $0x100] sm:$0xff]
        %v1615 = vld [vmem:[#allocation2 + $0x108] sm:$0xff]
        %1620 = vrot.lane.b32.xlu0 %v1612, 80
        %v1621 = vpop.permute.xlu0 %1620
        %1622 = vrot.lane.b32.xlu0 %v1613, 80
        %v1623 = vpop.permute.xlu0 %1622
        %1624 = vrot.lane.b32.xlu0 %v1614, 80
        %v1625 = vpop.permute.xlu0 %1624
        %1626 = vrot.lane.b32.xlu0 %v1615, 80
        %v1627 = vpop.permute.xlu0 %1626
        %vm1628 = vcmask 654336
        %v1629 = vsel %vm1628, %v1621, %v1623
        %v1630 = vsel %vm1628, %v1623, %v1625
        %v1631 = vsel %vm1628, %v1625, %v1627
        %v1636 = vadd.f32 %v1608, %v1629
        %v1637 = vadd.f32 %v1609, %v1630
        %v1638 = vadd.f32 %v1610, %v1631
        %v1639 = vadd.f32 %v1611, %v1627
        %v1640 = vld [vmem:[#allocation2 + $0x118] sm:$0xff]
        %v1641 = vld [vmem:[#allocation2 + $0x120] sm:$0xff]
        %v1642 = vld [vmem:[#allocation2 + $0x128] sm:$0xff]
        %v1643 = vld [vmem:[#allocation2 + $0x130] sm:$0xff]
        %1648 = vrot.lane.b32.xlu0 %v1640, 79
        %v1649 = vpop.permute.xlu0 %1648
        %1650 = vrot.lane.b32.xlu0 %v1641, 79
        %v1651 = vpop.permute.xlu0 %1650
        %1652 = vrot.lane.b32.xlu0 %v1642, 79
        %v1653 = vpop.permute.xlu0 %1652
        %1654 = vrot.lane.b32.xlu0 %v1643, 79
        %v1655 = vpop.permute.xlu0 %1654
        %vm1656 = vcmask 646144
        %v1657 = vsel %vm1656, %v1649, %v1651
        %v1658 = vsel %vm1656, %v1651, %v1653
        %v1659 = vsel %vm1656, %v1653, %v1655
        %v1664 = vadd.f32 %v1636, %v1657
        %v1665 = vadd.f32 %v1637, %v1658
        %v1666 = vadd.f32 %v1638, %v1659
        %v1667 = vadd.f32 %v1639, %v1655
        %v1668 = vld [vmem:[#allocation2 + $0x140] sm:$0xff]
        %v1669 = vld [vmem:[#allocation2 + $0x148] sm:$0xff]
        %v1670 = vld [vmem:[#allocation2 + $0x150] sm:$0xff]
        %v1671 = vld [vmem:[#allocation2 + $0x158] sm:$0xff]
        %1676 = vrot.lane.b32.xlu0 %v1668, 78
        %v1677 = vpop.permute.xlu0 %1676
        %1678 = vrot.lane.b32.xlu0 %v1669, 78
        %v1679 = vpop.permute.xlu0 %1678
        %1680 = vrot.lane.b32.xlu0 %v1670, 78
        %v1681 = vpop.permute.xlu0 %1680
        %1682 = vrot.lane.b32.xlu0 %v1671, 78
        %v1683 = vpop.permute.xlu0 %1682
        %vm1684 = vcmask 637952
        %v1685 = vsel %vm1684, %v1677, %v1679
        %v1686 = vsel %vm1684, %v1679, %v1681
        %v1687 = vsel %vm1684, %v1681, %v1683
        %v1692 = vadd.f32 %v1664, %v1685
        %v1693 = vadd.f32 %v1665, %v1686
        %v1694 = vadd.f32 %v1666, %v1687
        %v1695 = vadd.f32 %v1667, %v1683
        %v1696 = vld [vmem:[#allocation2 + $0x168] sm:$0xff]
        %v1697 = vld [vmem:[#allocation2 + $0x170] sm:$0xff]
        %v1698 = vld [vmem:[#allocation2 + $0x178] sm:$0xff]
        %v1699 = vld [vmem:[#allocation2 + $0x180] sm:$0xff]
        %1704 = vrot.lane.b32.xlu0 %v1696, 25
        %v1705 = vpop.permute.xlu0 %1704
        %1706 = vrot.lane.b32.xlu0 %v1697, 25
        %v1707 = vpop.permute.xlu0 %1706
        %1708 = vrot.lane.b32.xlu0 %v1698, 25
        %v1709 = vpop.permute.xlu0 %1708
        %1710 = vrot.lane.b32.xlu0 %v1699, 25
        %v1711 = vpop.permute.xlu0 %1710
        %vm1712 = vcmask 203776
        %v1713 = vsel %vm1712, %v1705, %v1707
        %v1714 = vsel %vm1712, %v1707, %v1709
        %v1715 = vsel %vm1712, %v1709, %v1711
        %v1720 = vadd.f32 %v1692, %v1705
        %v1721 = vadd.f32 %v1693, %v1713
        %v1722 = vadd.f32 %v1694, %v1714
        %v1723 = vadd.f32 %v1695, %v1715
        %v1724 = vld [vmem:[#allocation2 + $0x190] sm:$0xff]
        %v1725 = vld [vmem:[#allocation2 + $0x198] sm:$0xff]
        %v1726 = vld [vmem:[#allocation2 + $0x1a0] sm:$0xff]
        %v1727 = vld [vmem:[#allocation2 + $0x1a8] sm:$0xff]
        %1732 = vrot.lane.b32.xlu0 %v1724, 23
        %v1733 = vpop.permute.xlu0 %1732
        %1734 = vrot.lane.b32.xlu0 %v1725, 23
        %v1735 = vpop.permute.xlu0 %1734
        %1736 = vrot.lane.b32.xlu0 %v1726, 23
        %v1737 = vpop.permute.xlu0 %1736
        %1738 = vrot.lane.b32.xlu0 %v1727, 23
        %v1739 = vpop.permute.xlu0 %1738
        %vm1740 = vcmask 187392
        %v1741 = vsel %vm1740, %v1733, %v1735
        %v1742 = vsel %vm1740, %v1735, %v1737
        %v1743 = vsel %vm1740, %v1737, %v1739
        %v1748 = vadd.f32 %v1720, %v1733
        %v1749 = vadd.f32 %v1721, %v1741
        %v1750 = vadd.f32 %v1722, %v1742
        %v1751 = vadd.f32 %v1723, %v1743
        %v1752 = vld [vmem:[#allocation2 + $0x1b8] sm:$0xff]
        %v1753 = vld [vmem:[#allocation2 + $0x1c0] sm:$0xff]
        %v1754 = vld [vmem:[#allocation2 + $0x1c8] sm:$0xff]
        %v1755 = vld [vmem:[#allocation2 + $0x1d0] sm:$0xff]
        %1760 = vrot.lane.b32.xlu0 %v1752, 21
        %v1761 = vpop.permute.xlu0 %1760
        %1762 = vrot.lane.b32.xlu0 %v1753, 21
        %v1763 = vpop.permute.xlu0 %1762
        %1764 = vrot.lane.b32.xlu0 %v1754, 21
        %v1765 = vpop.permute.xlu0 %1764
        %1766 = vrot.lane.b32.xlu0 %v1755, 21
        %v1767 = vpop.permute.xlu0 %1766
        %vm1768 = vcmask 171008
        %v1769 = vsel %vm1768, %v1761, %v1763
        %v1770 = vsel %vm1768, %v1763, %v1765
        %v1771 = vsel %vm1768, %v1765, %v1767
        %v1776 = vadd.f32 %v1748, %v1761
        %v1777 = vadd.f32 %v1749, %v1769
        %v1778 = vadd.f32 %v1750, %v1770
        %v1779 = vadd.f32 %v1751, %v1771
        %v1780 = vld [vmem:[#allocation2 + $0x1e0] sm:$0xff]
        %v1781 = vld [vmem:[#allocation2 + $0x1e8] sm:$0xff]
        %v1782 = vld [vmem:[#allocation2 + $0x1f0] sm:$0xff]
        %v1783 = vld [vmem:[#allocation2 + $0x1f8] sm:$0xff]
        %1788 = vrot.lane.b32.xlu0 %v1780, 105
        %v1789 = vpop.permute.xlu0 %1788
        %1790 = vrot.lane.b32.xlu0 %v1781, 105
        %v1791 = vpop.permute.xlu0 %1790
        %1792 = vrot.lane.b32.xlu0 %v1782, 105
        %v1793 = vpop.permute.xlu0 %1792
        %1794 = vrot.lane.b32.xlu0 %v1783, 105
        %v1795 = vpop.permute.xlu0 %1794
        %vm1796 = vcmask 859136
        %v1797 = vsel %vm1796, %v1789, %v1791
        %v1798 = vsel %vm1796, %v1791, %v1793
        %v1799 = vsel %vm1796, %v1793, %v1795
        %v1804 = vadd.f32 %v1776, %v1797
        %v1805 = vadd.f32 %v1777, %v1798
        %v1806 = vadd.f32 %v1778, %v1799
        %v1807 = vadd.f32 %v1779, %v1795
        %v1808 = vld [vmem:[#allocation2 + $0x208] sm:$0xff]
        %v1809 = vld [vmem:[#allocation2 + $0x210] sm:$0xff]
        %v1810 = vld [vmem:[#allocation2 + $0x218] sm:$0xff]
        %v1811 = vld [vmem:[#allocation2 + $0x220] sm:$0xff]
        %1816 = vrot.lane.b32.xlu0 %v1808, 103
        %v1817 = vpop.permute.xlu0 %1816
        %1818 = vrot.lane.b32.xlu0 %v1809, 103
        %v1819 = vpop.permute.xlu0 %1818
        %1820 = vrot.lane.b32.xlu0 %v1810, 103
        %v1821 = vpop.permute.xlu0 %1820
        %1822 = vrot.lane.b32.xlu0 %v1811, 103
        %v1823 = vpop.permute.xlu0 %1822
        %v1824 = vsel %vm1572, %v1817, %v1819
        %v1825 = vsel %vm1572, %v1819, %v1821
        %v1826 = vsel %vm1572, %v1821, %v1823
        %v1831 = vadd.f32 %v1804, %v1824
        %v1832 = vadd.f32 %v1805, %v1825
        %v1833 = vadd.f32 %v1806, %v1826
        %v1834 = vadd.f32 %v1807, %v1823
        %v1835 = vld [vmem:[#allocation2 + $0x230] sm:$0xff]
        %v1836 = vld [vmem:[#allocation2 + $0x238] sm:$0xff]
        %v1837 = vld [vmem:[#allocation2 + $0x240] sm:$0xff]
        %v1838 = vld [vmem:[#allocation2 + $0x248] sm:$0xff]
        %1843 = vrot.lane.b32.xlu0 %v1835, 101
        %v1844 = vpop.permute.xlu0 %1843
        %1845 = vrot.lane.b32.xlu0 %v1836, 101
        %v1846 = vpop.permute.xlu0 %1845
        %1847 = vrot.lane.b32.xlu0 %v1837, 101
        %v1848 = vpop.permute.xlu0 %1847
        %1849 = vrot.lane.b32.xlu0 %v1838, 101
        %v1850 = vpop.permute.xlu0 %1849
        %vm1851 = vcmask 826368
        %v1852 = vsel %vm1851, %v1844, %v1846
        %v1853 = vsel %vm1851, %v1846, %v1848
        %v1854 = vsel %vm1851, %v1848, %v1850
        %v1859 = vadd.f32 %v1831, %v1852
        %v1860 = vadd.f32 %v1832, %v1853
        %v1861 = vadd.f32 %v1833, %v1854
        %v1862 = vadd.f32 %v1834, %v1850
        %v1863 = vld [vmem:[#allocation2 + $0x260] sm:$0xff]
        %v1864 = vld [vmem:[#allocation2 + $0x268] sm:$0xff]
        %v1865 = vld [vmem:[#allocation2 + $0x270] sm:$0xff]
        %v1866 = vld [vmem:[#allocation2 + $0x278] sm:$0xff]
        %1871 = vrot.lane.b32.xlu0 %v1863, 57
        %v1872 = vpop.permute.xlu0 %1871
        %1873 = vrot.lane.b32.xlu0 %v1864, 57
        %v1874 = vpop.permute.xlu0 %1873
        %1875 = vrot.lane.b32.xlu0 %v1865, 57
        %v1876 = vpop.permute.xlu0 %1875
        %1877 = vrot.lane.b32.xlu0 %v1866, 57
        %v1878 = vpop.permute.xlu0 %1877
        %vm1879 = vcmask 465920
        %v1880 = vsel %vm1879, %v1872, %v1874
        %v1881 = vsel %vm1879, %v1874, %v1876
        %v1882 = vsel %vm1879, %v1876, %v1878
        %v1887 = vadd.f32 %v1859, %v1872
        %v1888 = vadd.f32 %v1860, %v1880
        %v1889 = vadd.f32 %v1861, %v1881
        %v1890 = vadd.f32 %v1862, %v1882
        %v1891 = vld [vmem:[#allocation2 + $0x288] sm:$0xff]
        %v1892 = vld [vmem:[#allocation2 + $0x290] sm:$0xff]
        %v1893 = vld [vmem:[#allocation2 + $0x298] sm:$0xff]
        %v1894 = vld [vmem:[#allocation2 + $0x2a0] sm:$0xff]
        %1899 = vrot.lane.b32.xlu0 %v1891, 55
        %v1900 = vpop.permute.xlu0 %1899
        %1901 = vrot.lane.b32.xlu0 %v1892, 55
        %v1902 = vpop.permute.xlu0 %1901
        %1903 = vrot.lane.b32.xlu0 %v1893, 55
        %v1904 = vpop.permute.xlu0 %1903
        %1905 = vrot.lane.b32.xlu0 %v1894, 55
        %v1906 = vpop.permute.xlu0 %1905
        %vm1907 = vcmask 449536
        %v1908 = vsel %vm1907, %v1900, %v1902
        %v1909 = vsel %vm1907, %v1902, %v1904
        %v1910 = vsel %vm1907, %v1904, %v1906
        %v1915 = vadd.f32 %v1887, %v1900
        %v1916 = vadd.f32 %v1888, %v1908
        %v1917 = vadd.f32 %v1889, %v1909
        %v1918 = vadd.f32 %v1890, %v1910
        %v1919 = vld [vmem:[#allocation2 + $0x2b0] sm:$0xff]
        %v1920 = vld [vmem:[#allocation2 + $0x2b8] sm:$0xff]
        %v1921 = vld [vmem:[#allocation2 + $0x2c0] sm:$0xff]
        %v1922 = vld [vmem:[#allocation2 + $0x2c8] sm:$0xff]
        %1927 = vrot.lane.b32.xlu0 %v1919, 53
        %v1928 = vpop.permute.xlu0 %1927
        %1929 = vrot.lane.b32.xlu0 %v1920, 53
        %v1930 = vpop.permute.xlu0 %1929
        %1931 = vrot.lane.b32.xlu0 %v1921, 53
        %v1932 = vpop.permute.xlu0 %1931
        %1933 = vrot.lane.b32.xlu0 %v1922, 53
        %v1934 = vpop.permute.xlu0 %1933
        %vm1935 = vcmask 433152
        %v1936 = vsel %vm1935, %v1928, %v1930
        %v1937 = vsel %vm1935, %v1930, %v1932
        %v1938 = vsel %vm1935, %v1932, %v1934
        %v1943 = vadd.f32 %v1915, %v1928
        %v1944 = vadd.f32 %v1916, %v1936
        %v1945 = vadd.f32 %v1917, %v1937
        %v1946 = vadd.f32 %v1918, %v1938
        %v1947 = vld [vmem:[#allocation2 + $0x2d0] sm:$0xff]
        %v1948 = vld [vmem:[#allocation2 + $0x2d8] sm:$0xff]
        %v1949 = vld [vmem:[#allocation2 + $0x2e0] sm:$0xff]
        %1953 = vrot.lane.b32.xlu0 %v1947, 75
        %v1954 = vpop.permute.xlu0 %1953
        %1955 = vrot.lane.b32.xlu0 %v1948, 75
        %v1956 = vpop.permute.xlu0 %1955
        %1957 = vrot.lane.b32.xlu0 %v1949, 75
        %v1958 = vpop.permute.xlu0 %1957
        %vm1959 = vcmask 613376
        %v1960 = vsel %vm1959, %v1954, %v1956
        %v1961 = vsel %vm1959, %v1956, %v1958
        %v1966 = vadd.f32 %v1943, %v1954
        %v1967 = vadd.f32 %v1944, %v1960
        %v1968 = vadd.f32 %v1945, %v1961
        %v1969 = vadd.f32 %v1946, %v1958
        %v1970 = vld [vmem:[#allocation2 + $0x2f8] sm:$0xff]
        %v1971 = vld [vmem:[#allocation2 + $0x300] sm:$0xff]
        %v1972 = vld [vmem:[#allocation2 + $0x308] sm:$0xff]
        %v1973 = vld [vmem:[#allocation2 + $0x310] sm:$0xff]
        %1978 = vrot.lane.b32.xlu0 %v1970, 71
        %v1979 = vpop.permute.xlu0 %1978
        %1980 = vrot.lane.b32.xlu0 %v1971, 71
        %v1981 = vpop.permute.xlu0 %1980
        %1982 = vrot.lane.b32.xlu0 %v1972, 71
        %v1983 = vpop.permute.xlu0 %1982
        %1984 = vrot.lane.b32.xlu0 %v1973, 71
        %v1985 = vpop.permute.xlu0 %1984
        %vm1986 = vcmask 580608
        %v1987 = vsel %vm1986, %v1979, %v1981
        %v1988 = vsel %vm1986, %v1981, %v1983
        %v1989 = vsel %vm1986, %v1983, %v1985
        %v1994 = vadd.f32 %v1966, %v1979
        %v1995 = vadd.f32 %v1967, %v1987
        %v1996 = vadd.f32 %v1968, %v1988
        %v1997 = vadd.f32 %v1969, %v1989
        %v1998 = vld [vmem:[#allocation2 + $0x320] sm:$0xff]
        %v1999 = vld [vmem:[#allocation2 + $0x328] sm:$0xff]
        %v2000 = vld [vmem:[#allocation2 + $0x330] sm:$0xff]
        %v2001 = vld [vmem:[#allocation2 + $0x338] sm:$0xff]
        %2006 = vrot.lane.b32.xlu0 %v1998, 67
        %v2007 = vpop.permute.xlu0 %2006
        %2008 = vrot.lane.b32.xlu0 %v1999, 67
        %v2009 = vpop.permute.xlu0 %2008
        %2010 = vrot.lane.b32.xlu0 %v2000, 67
        %v2011 = vpop.permute.xlu0 %2010
        %2012 = vrot.lane.b32.xlu0 %v2001, 67
        %v2013 = vpop.permute.xlu0 %2012
        %vm2014 = vcmask 547840
        %v2015 = vsel %vm2014, %v2007, %v2009
        %v2016 = vsel %vm2014, %v2009, %v2011
        %v2017 = vsel %vm2014, %v2011, %v2013
        %v2022 = vadd.f32 %v1994, %v2007
        %v2023 = vadd.f32 %v1995, %v2015
        %v2024 = vadd.f32 %v1996, %v2016
        %v2025 = vadd.f32 %v1997, %v2017
        %v2026 = vld [vmem:[#allocation2 + $0x348] sm:$0xff]
        %v2027 = vld [vmem:[#allocation2 + $0x350] sm:$0xff]
        %v2028 = vld [vmem:[#allocation2 + $0x358] sm:$0xff]
        %v2029 = vld [vmem:[#allocation2 + $0x360] sm:$0xff]
        %2034 = vrot.lane.b32.xlu0 %v2026, 107
        %v2035 = vpop.permute.xlu0 %2034
        %2036 = vrot.lane.b32.xlu0 %v2027, 107
        %v2037 = vpop.permute.xlu0 %2036
        %2038 = vrot.lane.b32.xlu0 %v2028, 107
        %v2039 = vpop.permute.xlu0 %2038
        %2040 = vrot.lane.b32.xlu0 %v2029, 107
        %v2041 = vpop.permute.xlu0 %2040
        %vm2042 = vcmask 875520
        %v2043 = vsel %vm2042, %v2035, %v2037
        %v2044 = vsel %vm2042, %v2037, %v2039
        %v2045 = vsel %vm2042, %v2039, %v2041
        %v2050 = vadd.f32 %v2022, %v2043
        %v2051 = vadd.f32 %v2023, %v2044
        %v2052 = vadd.f32 %v2024, %v2045
        %v2053 = vadd.f32 %v2025, %v2041
        %v2054 = vld [vmem:[#allocation2 + $0x370] sm:$0xff]
        %v2055 = vld [vmem:[#allocation2 + $0x378] sm:$0xff]
        %v2056 = vld [vmem:[#allocation2 + $0x380] sm:$0xff]
        %v2057 = vld [vmem:[#allocation2 + $0x388] sm:$0xff]
        %2062 = vrot.lane.b32.xlu0 %v2054, 103
        %v2063 = vpop.permute.xlu0 %2062
        %2064 = vrot.lane.b32.xlu0 %v2055, 103
        %v2065 = vpop.permute.xlu0 %2064
        %2066 = vrot.lane.b32.xlu0 %v2056, 103
        %v2067 = vpop.permute.xlu0 %2066
        %2068 = vrot.lane.b32.xlu0 %v2057, 103
        %v2069 = vpop.permute.xlu0 %2068
        %v2070 = vsel %vm1572, %v2063, %v2065
        %v2071 = vsel %vm1572, %v2065, %v2067
        %v2072 = vsel %vm1572, %v2067, %v2069
        %v2077 = vadd.f32 %v2050, %v2070
        %v2078 = vadd.f32 %v2051, %v2071
        %v2079 = vadd.f32 %v2052, %v2072
        %v2080 = vadd.f32 %v2053, %v2069
        %v2081 = vld [vmem:[#allocation2 + $0x398] sm:$0xff]
        %v2082 = vld [vmem:[#allocation2 + $0x3a0] sm:$0xff]
        %v2083 = vld [vmem:[#allocation2 + $0x3a8] sm:$0xff]
        %v2084 = vld [vmem:[#allocation2 + $0x3b0] sm:$0xff]
        %2089 = vrot.lane.b32.xlu0 %v2081, 99
        %v2090 = vpop.permute.xlu0 %2089
        %2091 = vrot.lane.b32.xlu0 %v2082, 99
        %v2092 = vpop.permute.xlu0 %2091
        %2093 = vrot.lane.b32.xlu0 %v2083, 99
        %v2094 = vpop.permute.xlu0 %2093
        %2095 = vrot.lane.b32.xlu0 %v2084, 99
        %v2096 = vpop.permute.xlu0 %2095
        %vm2097 = vcmask 809984
        %v2098 = vsel %vm2097, %v2090, %v2092
        %v2099 = vsel %vm2097, %v2092, %v2094
        %v2100 = vsel %vm2097, %v2094, %v2096
        %v2105 = vadd.f32 %v2077, %v2098
        %v2106 = vadd.f32 %v2078, %v2099
        %v2107 = vadd.f32 %v2079, %v2100
        %v2108 = vadd.f32 %v2080, %v2096
        %v2109 = vld [vmem:[#allocation2 + $0x3c8] sm:$0xff]
        %v2110 = vld [vmem:[#allocation2 + $0x3d0] sm:$0xff]
        %v2111 = vld [vmem:[#allocation2 + $0x3d8] sm:$0xff]
        %v2112 = vld [vmem:[#allocation2 + $0x3e0] sm:$0xff]
        %2117 = vrot.lane.b32.xlu0 %v2109, 11
        %v2118 = vpop.permute.xlu0 %2117
        %2119 = vrot.lane.b32.xlu0 %v2110, 11
        %v2120 = vpop.permute.xlu0 %2119
        %2121 = vrot.lane.b32.xlu0 %v2111, 11
        %v2122 = vpop.permute.xlu0 %2121
        %2123 = vrot.lane.b32.xlu0 %v2112, 11
        %v2124 = vpop.permute.xlu0 %2123
        %vm2125 = vcmask 89088
        %v2126 = vsel %vm2125, %v2118, %v2120
        %v2127 = vsel %vm2125, %v2120, %v2122
        %v2128 = vsel %vm2125, %v2122, %v2124
        %v2133 = vadd.f32 %v2105, %v2118
        %v2134 = vadd.f32 %v2106, %v2126
        %v2135 = vadd.f32 %v2107, %v2127
        %v2136 = vadd.f32 %v2108, %v2128
        %v2137 = vld [vmem:[#allocation2 + $0x3f0] sm:$0xff]
        %v2138 = vld [vmem:[#allocation2 + $0x3f8] sm:$0xff]
        %v2139 = vld [vmem:[#allocation2 + $0x400] sm:$0xff]
        %v2140 = vld [vmem:[#allocation2 + $0x408] sm:$0xff]
        %2145 = vrot.lane.b32.xlu0 %v2137, 7
        %v2146 = vpop.permute.xlu0 %2145
        %2147 = vrot.lane.b32.xlu0 %v2138, 7
        %v2148 = vpop.permute.xlu0 %2147
        %2149 = vrot.lane.b32.xlu0 %v2139, 7
        %v2150 = vpop.permute.xlu0 %2149
        %2151 = vrot.lane.b32.xlu0 %v2140, 7
        %v2152 = vpop.permute.xlu0 %2151
        %vm2153 = vcmask 56320
        %v2154 = vsel %vm2153, %v2146, %v2148
        %v2155 = vsel %vm2153, %v2148, %v2150
        %v2156 = vsel %vm2153, %v2150, %v2152
        %v2161 = vadd.f32 %v2133, %v2146
        %v2162 = vadd.f32 %v2134, %v2154
        %v2163 = vadd.f32 %v2135, %v2155
        %v2164 = vadd.f32 %v2136, %v2156
        %v2165 = vld [vmem:[#allocation2 + $0x418] sm:$0xff]
        %v2166 = vld [vmem:[#allocation2 + $0x420] sm:$0xff]
        %v2167 = vld [vmem:[#allocation2 + $0x428] sm:$0xff]
        %v2168 = vld [vmem:[#allocation2 + $0x430] sm:$0xff]
        %2173 = vrot.lane.b32.xlu0 %v2165, 3
        %v2174 = vpop.permute.xlu0 %2173
        %2175 = vrot.lane.b32.xlu0 %v2166, 3
        %v2176 = vpop.permute.xlu0 %2175
        %2177 = vrot.lane.b32.xlu0 %v2167, 3
        %v2178 = vpop.permute.xlu0 %2177
        %2179 = vrot.lane.b32.xlu0 %v2168, 3
        %v2180 = vpop.permute.xlu0 %2179
        %vm2181 = vcmask 23552
        %v2182 = vsel %vm2181, %v2174, %v2176
        %v2183 = vsel %vm2181, %v2176, %v2178
        %v2184 = vsel %vm2181, %v2178, %v2180
        %v2189 = vadd.f32 %v2161, %v2174
        %v2190 = vadd.f32 %v2162, %v2182
        %v2191 = vadd.f32 %v2163, %v2183
        %v2192 = vadd.f32 %v2164, %v2184
        %v2193 = vld [vmem:[%s2] sm:$0xff]
        %2195 = vset.pattern.permute.xlu0 0
        %2196 = vperm.xlu0 %2195, %v2193
        %v2197 = vpop.permute.xlu0 %2196
        %v2199 = vadd.f32 %v2189, %v2197
        %v2200 = vadd.f32 %v2190, %v2197
        %v2201 = vadd.f32 %v2191, %v2197
        %v2202 = vadd.f32 %v2192, %v2197
        %2207 = vrot.lane.b32.xlu0 %v2199, 53
        %v2208 = vpop.permute.xlu0 %2207
        %2209 = vrot.lane.b32.xlu0 %v2200, 53
        %v2210 = vpop.permute.xlu0 %2209
        %2211 = vrot.lane.b32.xlu0 %v2201, 53
        %v2212 = vpop.permute.xlu0 %2211
        %2213 = vrot.lane.b32.xlu0 %v2202, 53
        %v2214 = vpop.permute.xlu0 %2213
        %v2215 = vsel %vm1935, %v2208, %v2210
        %v2216 = vsel %vm1935, %v2210, %v2212
        %v2217 = vsel %vm1935, %v2212, %v2214
        %2221 = vst [vmem:[%s163] sm:$0xff] %v2215
        %2222 = vst [vmem:[%s163 + $0x8] sm:$0xff] %v2216
        %2223 = vst [vmem:[%s163 + $0x10] sm:$0xff] %v2217
        %s2224 = sand.u32 %s93, 1
        %s2225 = scalar_lea.sflag [#allocation4], %s2224
        %s2226 = sand.u32 %s93, 1
        %s2227 = smul.addr %s2226, 24
        %s2228 = scalar_lea.vmem [#allocation3], %s2227
        // Predicated region
        $region33: #{tpu_custom_call.1} parent=31 // pred_check
          %p2229 = pneg %p103
        $region34: #{tpu_custom_call.1} parent=31 // pred_check_branch
          %2231 = sbr.rel (%p2229) target = $region36
        $region35: #{tpu_custom_call.1} parent=31 // pred_region
          %s2233 = ssub.s32 384, 384
          %2234 = vsyncadd %s2225, %s2233
          %s2235 = smul.addr %s17, 3
          %s2236 = smul.addr %s2235, 128
          %s2237 = scalar_lea.hbm %s3, %s2236
          %s2239 = sshll.u32 %s2228, 4
          %s2240 = int_to_ptr.vmem [resolvable:$true] %s2239
          %2242 = dma.vmem_to_hbm [thread:$0]  %s2240, 384, %s2237, %s2225
        $region36: #{tpu_custom_call.1} parent=31 // pred_fallthru
          _
      $region32: #{tpu_custom_call.1} parent=5 // pred_fallthru
        _
      %p2243 = scmp.le.s32.totalorder 2, %s12
      // Predicated region
      $region37: #{tpu_custom_call.1} parent=5 // pred_check
        %p2244 = pneg %p2243
      $region38: #{tpu_custom_call.1} parent=5 // pred_check_branch
        %2246 = sbr.rel (%p2244) target = $region40
      $region39: #{tpu_custom_call.1} parent=5 // pred_region
        %s2247 = ssub.s32 %s12, 2
        // Predicated region
        $region41: #{tpu_custom_call.1} parent=39 // pred_check
          %p2248 = pneg %p109
        $region42: #{tpu_custom_call.1} parent=39 // pred_check_branch
          %2250 = sbr.rel (%p2248) target = $region44
        $region43: #{tpu_custom_call.1} parent=39 // pred_region
          %s2251 = sand.u32 %s94, 1
          %s2252 = scalar_lea.sflag [#allocation4], %s2251
          %s2253 = sand.u32 %s94, 1
          %s2254 = smul.addr %s2253, 24
          %s2255 = scalar_lea.vmem [#allocation3], %s2254
          %2256 = dma.done %s2252, 384
        $region44: #{tpu_custom_call.1} parent=39 // pred_fallthru
          _
      $region40: #{tpu_custom_call.1} parent=5 // pred_fallthru
        _
    $region6: #{tpu_custom_call.1} parent=1 // loop_footer
      %s16 = sadd.s32 1, %s12
    $region7: #{tpu_custom_call.1} parent=1 // loop_footer_branch
      %11 = sbr.rel target = $region3
    $region8: #{tpu_custom_call.1} parent=1 // loop_exit
      _
    %2257 = vsyncpa [#allocation4], 1
    %s2258 = scalar_lea.sflag [#allocation4], 1
    %2259 = vsyncpa %s2258, 1

</llo_original>
